<compile_context>
chip_gen: v7x
topology: tpu7x:2x2x1
jax: 0.10.0
libtpu: 0.0.40
codegen_flags: <defaults>
</compile_context>

<pallas_src>
import functools

import numpy as np

import jax
import jax.numpy as jnp
from jax import lax
from jax.experimental import pallas as pl
from jax.experimental.pallas import tpu as pltpu


# ---------------------------------------------------------------------------
# Weight-matrix builders (run once per parameter set in prepare_*; tiny).
# Activations inside the kernel use a lane-flattened NHWC layout:
#   feature row (n, i) is a vector of length W*C with lane index  j*C + c.
# ---------------------------------------------------------------------------
def _conv1_matrix(w_t, W):
    """ConvTranspose2d(k=3, stride=2, padding=1, output_padding=1) as one matmul.

    Returns (2*W*Cin, 2*W2*Cout): rows [0:W*Cin] act on x[n,i,:], rows [W*Cin:] act on
    x[n,i+1,:].  Output lanes: [even output row 2i | odd output row 2i+1], each of
    length 2W*Cout, already column-interleaved.  w_t is PyTorch weight (Cin, Cout, 3, 3).
    """
    W2 = 2 * W

    def place(q, dj):
        # 1 at (input col j+dj, output col 2j+q); drops out-of-range input columns.
        p = np.zeros((W, W2), np.float32)
        for j in range(W):
            if 0 <= j + dj < W:
                p[j + dj, 2 * j + q] = 1.0
        return jnp.asarray(p)

    def rowblock(kh):
        # contribution of one input row paired with kernel row kh
        return (jnp.kron(place(0, 0), w_t[:, :, kh, 1])
                + jnp.kron(place(1, 0), w_t[:, :, kh, 2])
                + jnp.kron(place(1, 1), w_t[:, :, kh, 0]))

    even_from_lo = rowblock(1)    # x[n, i  , :] -> even output row 2i
    odd_from_lo = rowblock(2)     # x[n, i  , :] -> odd  output row 2i+1
    odd_from_hi = rowblock(0)     # x[n, i+1, :] -> odd  output row 2i+1
    zeros = jnp.zeros_like(even_from_lo)
    top = jnp.concatenate([even_from_lo, odd_from_lo], axis=1)
    bot = jnp.concatenate([zeros, odd_from_hi], axis=1)
    return jnp.concatenate([top, bot], axis=0)        # (2*W*Cin, 2*W2*Cout)


def _conv_s1_matrix(w_t, W2):
    """ConvTranspose2d(k=3, stride=1, padding=1) as a block-Toeplitz matmul.

    Returns (3*W2*Cin, W2*Cout): slab dh acts on input row i+dh-1 (zero rows at the
    border).  Output lane layout j*C + c.  w_t is PyTorch weight (Cin, Cout, 3, 3).
    """
    blocks = []
    for dh in range(3):            # slab dh holds input row i + dh - 1
        kh = 2 - dh                # paired transposed-conv kernel row
        acc = None
        for kw in range(3):
            q = jnp.asarray(np.eye(W2, k=kw - 1, dtype=np.float32))
            term = jnp.kron(q, w_t[:, :, kh, kw])
            acc = term if acc is None else acc + term
        blocks.append(acc)
    return jnp.concatenate(blocks, axis=0)            # (3*W2*Cin, W2*Cout)


# ---------------------------------------------------------------------------
# One-time parameter preparation (hoisted out of the per-call path).
# ---------------------------------------------------------------------------
def prepare_decoder_block_params(params, H, W):
    """Build matmul weight matrices + packed per-channel vectors once per param set."""
    Cin, Cout = params["c1_w"].shape[0], params["c1_w"].shape[1]
    H2, W2 = 2 * H, 2 * W
    L = W2 * Cout
    WCin = W * Cin

    w1 = _conv1_matrix(params["c1_w"], W).reshape(2, WCin, 2 * L)   # [lo-row | hi-row]
    w2 = _conv_s1_matrix(params["c2_w"], W2).reshape(3, L, L)       # [row i-1, i, i+1]
    w3 = _conv_s1_matrix(params["c3_w"], W2).reshape(3, L, L)

    # Channel-group averaging matrix: (rowsum over N*H2 rows) @ pnorm * (1/N) gives the
    # per-channel mean tiled over lanes.  1/(H2*W2) is baked in; 1/N applied in-kernel
    # so the prepared params are batch-size independent.
    pnorm = jnp.asarray(
        np.kron(np.ones((W2, W2), np.float32), np.eye(Cout, dtype=np.float32))
        / np.float32(H2 * W2))

    def lane_tile(v):                              # (Cout,) -> (1, W2*Cout)
        return jnp.tile(jnp.reshape(v.astype(jnp.float32), (1, Cout)), (1, W2))

    # Packed vector params: [c1_b, c2_b, c3_b, b1_g, b1_b, b2_g, b2_b, b3_g, b3_b]
    vec = jnp.concatenate([
        lane_tile(params["c1_b"]), lane_tile(params["c2_b"]), lane_tile(params["c3_b"]),
        lane_tile(params["b1_g"]), lane_tile(params["b1_b"]),
        lane_tile(params["b2_g"]), lane_tile(params["b2_b"]),
        lane_tile(params["b3_g"]), lane_tile(params["b3_b"]),
    ], axis=0)                                                       # (9, L)

    return {"w1": w1, "w2": w2, "w3": w3, "pnorm": pnorm, "vec": vec}


# ---------------------------------------------------------------------------
# Fused kernel: conv1 -> BN1 -> (y) -> conv2 -> BN2 -> ReLU -> conv3 -> BN3 -> +y (-> ReLU)
# ---------------------------------------------------------------------------
def _decoder_block_kernel(x_ref, w1_ref, w2_ref, w3_ref, pn_ref, vec_ref,
                          o_ref, xp2_ref, *, apply_final_relu):
    N, Hpad, L = xp2_ref.shape
    H2 = Hpad - 2
    M = o_ref.shape[0]               # M = N * H2

    pn = pn_ref[...]                 # (L, L) channel-group averaging / (H2*W2)
    v = vec_ref[...]                 # (9, L) packed per-channel vectors (lane-tiled)
    b1, b2, b3 = v[0:1, :], v[1:2, :], v[2:3, :]
    g1, be1 = v[3:4, :], v[4:5, :]
    g2, be2 = v[5:6, :], v[6:7, :]
    g3, be3 = v[7:8, :], v[8:9, :]
    inv_n = 1.0 / N

    def bn(t, gamma, beta):
        # Training-mode BatchNorm2d (biased variance, eps=1e-5) on a lane-flattened
        # (rows, W*C) activation.  One (2,L)@(L,L) dot gives [mean; E[x^2]] per channel
        # tiled over lanes; var = E[x^2] - mean^2 (clamped for cancellation safety).
        s = jnp.sum(t, axis=0, keepdims=True)
        ss = jnp.sum(t * t, axis=0, keepdims=True)
        stats = jnp.dot(jnp.concatenate([s, ss], axis=0), pn,
                        preferred_element_type=jnp.float32) * inv_n
        mean = stats[0:1, :]
        var = jnp.maximum(stats[1:2, :] - mean * mean, 0.0)
        return (t - mean) * (gamma * lax.rsqrt(var + 1e-5)) + beta

    # ---- c1: stride-2 ConvTranspose2d, polyphase, two accumulating dots ------------
    r1 = (jnp.dot(x_ref[0], w1_ref[0], preferred_element_type=jnp.float32)
          + jnp.dot(x_ref[1], w1_ref[1], preferred_element_type=jnp.float32))
    # Lane halves [even row 2i | odd row 2i+1] become interleaved output rows with a
    # pure reshape (MH, 2L) -> (M, L); no staging scratch, no masked sublane stores.
    x1 = r1.reshape(M, L) + b1
    y = bn(x1, g1, be1)              # residual stays in VMEM/vregs

    # ---- row-padded staging buffer for the stride-1 convs: zero ONLY the halo rows --
    zrow = jnp.zeros((N, 1, L), jnp.float32)
    xp2_ref[:, 0:1, :] = zrow
    xp2_ref[:, H2 + 1:H2 + 2, :] = zrow

    def conv_s1(t, w_ref, bias):
        # Block-Toeplitz stride-1 ConvTranspose2d: three accumulating (M,L)@(L,L) dots.
        xp2_ref[:, 1:H2 + 1, :] = t.reshape(N, H2, L)    # halo rows stay zero
        s0 = xp2_ref[:, 0:H2, :].reshape(M, L)           # row i-1
        s2 = xp2_ref[:, 2:H2 + 2, :].reshape(M, L)       # row i+1
        return (jnp.dot(s0, w_ref[0], preferred_element_type=jnp.float32)
                + jnp.dot(t, w_ref[1], preferred_element_type=jnp.float32)
                + jnp.dot(s2, w_ref[2], preferred_element_type=jnp.float32)
                + bias)

    # ---- c2 + b2 + ReLU --------------------------------------------------------------
    x2 = jnp.maximum(bn(conv_s1(y, w2_ref, b2), g2, be2), 0.0)

    # ---- c3 + b3 + residual (+ ReLU) ---------------------------------------------------
    out = bn(conv_s1(x2, w3_ref, b3), g3, be3) + y
    if apply_final_relu:
        out = jnp.maximum(out, 0.0)
    o_ref[...] = out.astype(o_ref.dtype)                 # lane-dense (M, L) slab store


# ---------------------------------------------------------------------------
# Wrapper (PyTorch NCHW in/out).  Call prepare_decoder_block_params() once per
# parameter set; decoder_block_apply() is the per-forward path.
# ---------------------------------------------------------------------------
def decoder_block_apply(prep, x_nchw, *, last_layer=False):
    N, Cin, H, W = x_nchw.shape
    H2, W2 = 2 * H, 2 * W
    L = prep["pnorm"].shape[0]
    Cout = L // W2
    WCin = W * Cin
    MH, M = N * H, N * H2

    # NCHW -> lane-flattened rows (n, h) x lanes (w*Cin + c); pair each row with the
    # next row (zero at the bottom) for the polyphase stride-2 conv1.  Done here in XLA
    # so the kernel has no padded-input copy / memset.
    xf = jnp.transpose(x_nchw, (0, 2, 3, 1)).reshape(N, H, WCin).astype(jnp.float32)
    x_lo = xf.reshape(MH, WCin)
    x_hi = jnp.concatenate(
        [xf[:, 1:, :], jnp.zeros((N, 1, WCin), jnp.float32)], axis=1).reshape(MH, WCin)
    x_pair = jnp.stack([x_lo, x_hi], axis=0)              # (2, MH, WCin)

    vmem = pl.BlockSpec(memory_space=pltpu.MemorySpace.VMEM)
    out = pl.pallas_call(
        functools.partial(_decoder_block_kernel, apply_final_relu=not last_layer),
        out_shape=jax.ShapeDtypeStruct((M, L), jnp.float32),
        in_specs=[vmem] * 6,
        out_specs=vmem,
        scratch_shapes=[
            pltpu.VMEM((N, H2 + 2, L), jnp.float32),      # row-padded conv2/3 input
        ],
        compiler_params=pltpu.CompilerParams(
            vmem_limit_bytes=16 * 1024 * 1024),           # footprint << 1 MiB; headroom
    )(x_pair, prep["w1"], prep["w2"], prep["w3"], prep["pnorm"], prep["vec"])

    return jnp.transpose(out.reshape(N, H2, W2, Cout), (0, 3, 1, 2))   # NCHW


def decoder_block_forward(x_nchw, params, *, last_layer=False):
    """Convenience one-shot wrapper (prep is NOT cached here; prefer prepare+apply)."""
    _, _, H, W = x_nchw.shape
    prep = prepare_decoder_block_params(params, H, W)
    return decoder_block_apply(prep, x_nchw, last_layer=last_layer)


# ---------------------------------------------------------------------------
# Pure-JAX reference (for a self-check in __main__).
# ---------------------------------------------------------------------------
def _convT_ref(x_nhwc, w_t, b, stride):
    wk = jnp.transpose(w_t[:, :, ::-1, ::-1], (2, 3, 0, 1))  # (kh, kw, Cin, Cout)
    pad = ((1, 2), (1, 2)) if stride == 2 else ((1, 1), (1, 1))
    y = lax.conv_general_dilated(
        x_nhwc, wk, window_strides=(1, 1), padding=pad,
        lhs_dilation=(stride, stride),
        dimension_numbers=("NHWC", "HWIO", "NHWC"),
        precision=lax.Precision.HIGHEST)
    return y + b.reshape(1, 1, 1, -1)


def _bn_ref(x, g, b):
    m = jnp.mean(x, axis=(0, 1, 2))
    v = jnp.mean(jnp.square(x - m), axis=(0, 1, 2))
    return (x - m) * lax.rsqrt(v + 1e-5) * g.reshape(-1) + b.reshape(-1)


def _decoder_block_ref(x_nchw, params, *, last_layer):
    x = jnp.transpose(x_nchw, (0, 2, 3, 1))
    x1 = _bn_ref(_convT_ref(x, params["c1_w"], params["c1_b"], 2),
                 params["b1_g"], params["b1_b"])
    y = x1
    x2 = jax.nn.relu(_bn_ref(_convT_ref(x1, params["c2_w"], params["c2_b"], 1),
                             params["b2_g"], params["b2_b"]))
    x3 = _bn_ref(_convT_ref(x2, params["c3_w"], params["c3_b"], 1),
                 params["b3_g"], params["b3_b"])
    out = y + x3
    if not last_layer:
        out = jax.nn.relu(out)
    return jnp.transpose(out, (0, 3, 1, 2))


# ---------------------------------------------------------------------------
if __name__ == "__main__":
    key = jax.random.PRNGKey(0)
    N, Cin, Cout, H, W = 2, 4, 8, 8, 8        # output: (2, 8, 16, 16); 2W*Cout = 128 lanes
    ks = jax.random.split(key, 8)

    params = {
        # ConvTranspose2d weights: (in_channels, out_channels, 3, 3); bias per out channel.
        "c1_w": 0.1 * jax.random.normal(ks[0], (Cin, Cout, 3, 3), jnp.float32),
        "c1_b": 0.1 * jax.random.normal(ks[1], (Cout,), jnp.float32),
        "c2_w": 0.1 * jax.random.normal(ks[2], (Cout, Cout, 3, 3), jnp.float32),
        "c2_b": 0.1 * jax.random.normal(ks[3], (Cout,), jnp.float32),
        "c3_w": 0.1 * jax.random.normal(ks[4], (Cout, Cout, 3, 3), jnp.float32),
        "c3_b": 0.1 * jax.random.normal(ks[5], (Cout,), jnp.float32),
        # BatchNorm2d default init: weight=1, bias=0.
        "b1_g": jnp.ones((Cout,), jnp.float32), "b1_b": jnp.zeros((Cout,), jnp.float32),
        "b2_g": jnp.ones((Cout,), jnp.float32), "b2_b": jnp.zeros((Cout,), jnp.float32),
        "b3_g": jnp.ones((Cout,), jnp.float32), "b3_b": jnp.zeros((Cout,), jnp.float32),
    }

    x = jax.random.normal(ks[6], (N, Cin, H, W), jnp.float32)   # NCHW, like PyTorch

    # Weight prep runs ONCE per parameter set (perf-review item); the jitted forward
    # only sees the prepared matmul matrices / packed vectors.
    prep = prepare_decoder_block_params(params, H, W)
    fwd = jax.jit(decoder_block_apply, static_argnames=("last_layer",))

    out = fwd(prep, x, last_layer=False)
    jax.block_until_ready(out)
    assert out.shape == (N, Cout, 2 * H, 2 * W), out.shape
    ref = _decoder_block_ref(x, params, last_layer=False)
    np.testing.assert_allclose(np.asarray(out), np.asarray(ref), rtol=5e-2, atol=5e-2)

    out_last = fwd(prep, x, last_layer=True)
    jax.block_until_ready(out_last)
    assert out_last.shape == (N, Cout, 2 * H, 2 * W), out_last.shape
    ref_last = _decoder_block_ref(x, params, last_layer=True)
    np.testing.assert_allclose(np.asarray(out_last), np.asarray(ref_last),
                               rtol=5e-2, atol=5e-2)

    print("KERNEL_OK")
</pallas_src>

<mosaic_0001>
module attributes {stable_mosaic.version = 11 : i64} {
  func.func @_decoder_block_kernel(%arg0: memref<2x16x32xf32, #tpu.memory_space<vmem>>, %arg1: memref<2x32x256xf32, #tpu.memory_space<vmem>>, %arg2: memref<3x128x128xf32, #tpu.memory_space<vmem>>, %arg3: memref<3x128x128xf32, #tpu.memory_space<vmem>>, %arg4: memref<128x128xf32, #tpu.memory_space<vmem>>, %arg5: memref<9x128xf32, #tpu.memory_space<vmem>>, %arg6: memref<32x128xf32, #tpu.memory_space<vmem>>, %arg7: memref<2x18x128xf32, #tpu.memory_space<vmem>>) attributes {dimension_semantics = [], scalar_prefetch = 0 : i64, scratch_operands = 1 : i64, tpu.core_type = #tpu.core_type<tc>} {
    %c0 = arith.constant 0 : index
    %c0_0 = arith.constant 0 : index
    %0 = vector.load %arg4[%c0, %c0_0] : memref<128x128xf32, #tpu.memory_space<vmem>>, vector<128x128xf32>
    %c0_1 = arith.constant 0 : index
    %c0_2 = arith.constant 0 : index
    %1 = vector.load %arg5[%c0_1, %c0_2] : memref<9x128xf32, #tpu.memory_space<vmem>>, vector<9x128xf32>
    %2 = vector.extract_strided_slice %1 {offsets = [0, 0], sizes = [1, 128], strides = [1, 1]} : vector<9x128xf32> to vector<1x128xf32>
    %3 = vector.extract_strided_slice %1 {offsets = [1, 0], sizes = [1, 128], strides = [1, 1]} : vector<9x128xf32> to vector<1x128xf32>
    %4 = vector.extract_strided_slice %1 {offsets = [2, 0], sizes = [1, 128], strides = [1, 1]} : vector<9x128xf32> to vector<1x128xf32>
    %5 = vector.extract_strided_slice %1 {offsets = [3, 0], sizes = [1, 128], strides = [1, 1]} : vector<9x128xf32> to vector<1x128xf32>
    %6 = vector.extract_strided_slice %1 {offsets = [4, 0], sizes = [1, 128], strides = [1, 1]} : vector<9x128xf32> to vector<1x128xf32>
    %7 = vector.extract_strided_slice %1 {offsets = [5, 0], sizes = [1, 128], strides = [1, 1]} : vector<9x128xf32> to vector<1x128xf32>
    %8 = vector.extract_strided_slice %1 {offsets = [6, 0], sizes = [1, 128], strides = [1, 1]} : vector<9x128xf32> to vector<1x128xf32>
    %9 = vector.extract_strided_slice %1 {offsets = [7, 0], sizes = [1, 128], strides = [1, 1]} : vector<9x128xf32> to vector<1x128xf32>
    %10 = vector.extract_strided_slice %1 {offsets = [8, 0], sizes = [1, 128], strides = [1, 1]} : vector<9x128xf32> to vector<1x128xf32>
    %c0_3 = arith.constant 0 : index
    %c0_4 = arith.constant 0 : index
    %c0_5 = arith.constant 0 : index
    %11 = vector.load %arg0[%c0_3, %c0_4, %c0_5] : memref<2x16x32xf32, #tpu.memory_space<vmem>>, vector<1x16x32xf32>
    %12 = vector.shape_cast %11 : vector<1x16x32xf32> to vector<16x32xf32>
    %c0_6 = arith.constant 0 : index
    %c0_7 = arith.constant 0 : index
    %c0_8 = arith.constant 0 : index
    %13 = vector.load %arg1[%c0_6, %c0_7, %c0_8] : memref<2x32x256xf32, #tpu.memory_space<vmem>>, vector<1x32x256xf32>
    %14 = vector.shape_cast %13 : vector<1x32x256xf32> to vector<32x256xf32>
    %cst = arith.constant dense<0.000000e+00> : vector<16x256xf32>
    %15 = tpu.matmul %12, %14, %cst {dimension_numbers = #tpu.dot_dimension_numbers<[1], [0], [0], [1], [0, 0, 1, 1], [], []>} : vector<16x32xf32>, vector<32x256xf32>, vector<16x256xf32> -> vector<16x256xf32>
    %c1 = arith.constant 1 : index
    %c0_9 = arith.constant 0 : index
    %c0_10 = arith.constant 0 : index
    %16 = vector.load %arg0[%c1, %c0_9, %c0_10] : memref<2x16x32xf32, #tpu.memory_space<vmem>>, vector<1x16x32xf32>
    %17 = vector.shape_cast %16 : vector<1x16x32xf32> to vector<16x32xf32>
    %c1_11 = arith.constant 1 : index
    %c0_12 = arith.constant 0 : index
    %c0_13 = arith.constant 0 : index
    %18 = vector.load %arg1[%c1_11, %c0_12, %c0_13] : memref<2x32x256xf32, #tpu.memory_space<vmem>>, vector<1x32x256xf32>
    %19 = vector.shape_cast %18 : vector<1x32x256xf32> to vector<32x256xf32>
    %cst_14 = arith.constant dense<0.000000e+00> : vector<16x256xf32>
    %20 = tpu.matmul %17, %19, %cst_14 {dimension_numbers = #tpu.dot_dimension_numbers<[1], [0], [0], [1], [0, 0, 1, 1], [], []>} : vector<16x32xf32>, vector<32x256xf32>, vector<16x256xf32> -> vector<16x256xf32>
    %21 = arith.addf %15, %20 : vector<16x256xf32>
    %22 = vector.shape_cast %21 : vector<16x256xf32> to vector<32x128xf32>
    %23 = vector.broadcast %2 : vector<1x128xf32> to vector<32x128xf32>
    %24 = arith.addf %22, %23 : vector<32x128xf32>
    %cst_15 = arith.constant dense<0.000000e+00> : vector<128xf32>
    %25 = vector.multi_reduction <add>, %24, %cst_15 [0] : vector<32x128xf32> to vector<128xf32>
    %26 = vector.shape_cast %25 : vector<128xf32> to vector<1x128xf32>
    %27 = arith.mulf %24, %24 : vector<32x128xf32>
    %cst_16 = arith.constant dense<0.000000e+00> : vector<128xf32>
    %28 = vector.multi_reduction <add>, %27, %cst_16 [0] : vector<32x128xf32> to vector<128xf32>
    %29 = vector.shape_cast %28 : vector<128xf32> to vector<1x128xf32>
    %30 = tpu.concatenate %26, %29 in 0 : vector<1x128xf32>, vector<1x128xf32> -> vector<2x128xf32>
    %cst_17 = arith.constant dense<0.000000e+00> : vector<2x128xf32>
    %31 = tpu.matmul %30, %0, %cst_17 {dimension_numbers = #tpu.dot_dimension_numbers<[1], [0], [0], [1], [0, 0, 1, 1], [], []>} : vector<2x128xf32>, vector<128x128xf32>, vector<2x128xf32> -> vector<2x128xf32>
    %cst_18 = arith.constant 5.000000e-01 : f32
    %32 = vector.broadcast %cst_18 : f32 to vector<2x128xf32>
    %33 = arith.mulf %31, %32 : vector<2x128xf32>
    %34 = vector.extract_strided_slice %33 {offsets = [0, 0], sizes = [1, 128], strides = [1, 1]} : vector<2x128xf32> to vector<1x128xf32>
    %35 = vector.extract_strided_slice %33 {offsets = [1, 0], sizes = [1, 128], strides = [1, 1]} : vector<2x128xf32> to vector<1x128xf32>
    %36 = arith.mulf %34, %34 : vector<1x128xf32>
    %37 = arith.subf %35, %36 : vector<1x128xf32>
    %cst_19 = arith.constant 0.000000e+00 : f32
    %38 = vector.broadcast %cst_19 : f32 to vector<1x128xf32>
    %39 = arith.maximumf %37, %38 : vector<1x128xf32>
    %40 = vector.broadcast %34 : vector<1x128xf32> to vector<32x128xf32>
    %41 = arith.subf %24, %40 : vector<32x128xf32>
    %cst_20 = arith.constant 9.99999974E-6 : f32
    %42 = vector.broadcast %cst_20 : f32 to vector<1x128xf32>
    %43 = arith.addf %39, %42 : vector<1x128xf32>
    %44 = math.rsqrt %43 : vector<1x128xf32>
    %45 = arith.mulf %5, %44 : vector<1x128xf32>
    %46 = vector.broadcast %45 : vector<1x128xf32> to vector<32x128xf32>
    %47 = arith.mulf %41, %46 : vector<32x128xf32>
    %48 = vector.broadcast %6 : vector<1x128xf32> to vector<32x128xf32>
    %49 = arith.addf %47, %48 : vector<32x128xf32>
    %cst_21 = arith.constant 0.000000e+00 : f32
    %50 = vector.broadcast %cst_21 : f32 to vector<2x1x128xf32>
    %c0_22 = arith.constant 0 : index
    %c0_23 = arith.constant 0 : index
    %c0_24 = arith.constant 0 : index
    %51 = vector.load %arg7[%c0_22, %c0_23, %c0_24] : memref<2x18x128xf32, #tpu.memory_space<vmem>>, vector<2x1x128xf32>
    tpu.vector_store %arg7[%c0_22, %c0_23, %c0_24], %50 {strides = array<i32>} : memref<2x18x128xf32, #tpu.memory_space<vmem>>, vector<2x1x128xf32>,
    %c0_25 = arith.constant 0 : index
    %c17 = arith.constant 17 : index
    %c0_26 = arith.constant 0 : index
    %52 = vector.load %arg7[%c0_25, %c17, %c0_26] : memref<2x18x128xf32, #tpu.memory_space<vmem>>, vector<2x1x128xf32>
    tpu.vector_store %arg7[%c0_25, %c17, %c0_26], %50 {strides = array<i32>} : memref<2x18x128xf32, #tpu.memory_space<vmem>>, vector<2x1x128xf32>,
    %53 = vector.shape_cast %49 : vector<32x128xf32> to vector<2x16x128xf32>
    %c0_27 = arith.constant 0 : index
    %c1_28 = arith.constant 1 : index
    %c0_29 = arith.constant 0 : index
    %54 = vector.load %arg7[%c0_27, %c1_28, %c0_29] : memref<2x18x128xf32, #tpu.memory_space<vmem>>, vector<2x16x128xf32>
    tpu.vector_store %arg7[%c0_27, %c1_28, %c0_29], %53 {strides = array<i32>} : memref<2x18x128xf32, #tpu.memory_space<vmem>>, vector<2x16x128xf32>,
    %c0_30 = arith.constant 0 : index
    %c0_31 = arith.constant 0 : index
    %c0_32 = arith.constant 0 : index
    %55 = vector.load %arg7[%c0_30, %c0_31, %c0_32] : memref<2x18x128xf32, #tpu.memory_space<vmem>>, vector<2x16x128xf32>
    %56 = vector.shape_cast %55 : vector<2x16x128xf32> to vector<32x128xf32>
    %c0_33 = arith.constant 0 : index
    %c2 = arith.constant 2 : index
    %c0_34 = arith.constant 0 : index
    %57 = vector.load %arg7[%c0_33, %c2, %c0_34] : memref<2x18x128xf32, #tpu.memory_space<vmem>>, vector<2x16x128xf32>
    %58 = vector.shape_cast %57 : vector<2x16x128xf32> to vector<32x128xf32>
    %c0_35 = arith.constant 0 : index
    %c0_36 = arith.constant 0 : index
    %c0_37 = arith.constant 0 : index
    %59 = vector.load %arg2[%c0_35, %c0_36, %c0_37] : memref<3x128x128xf32, #tpu.memory_space<vmem>>, vector<1x128x128xf32>
    %60 = vector.shape_cast %59 : vector<1x128x128xf32> to vector<128x128xf32>
    %cst_38 = arith.constant dense<0.000000e+00> : vector<32x128xf32>
    %61 = tpu.matmul %56, %60, %cst_38 {dimension_numbers = #tpu.dot_dimension_numbers<[1], [0], [0], [1], [0, 0, 1, 1], [], []>} : vector<32x128xf32>, vector<128x128xf32>, vector<32x128xf32> -> vector<32x128xf32>
    %c1_39 = arith.constant 1 : index
    %c0_40 = arith.constant 0 : index
    %c0_41 = arith.constant 0 : index
    %62 = vector.load %arg2[%c1_39, %c0_40, %c0_41] : memref<3x128x128xf32, #tpu.memory_space<vmem>>, vector<1x128x128xf32>
    %63 = vector.shape_cast %62 : vector<1x128x128xf32> to vector<128x128xf32>
    %cst_42 = arith.constant dense<0.000000e+00> : vector<32x128xf32>
    %64 = tpu.matmul %49, %63, %cst_42 {dimension_numbers = #tpu.dot_dimension_numbers<[1], [0], [0], [1], [0, 0, 1, 1], [], []>} : vector<32x128xf32>, vector<128x128xf32>, vector<32x128xf32> -> vector<32x128xf32>
    %65 = arith.addf %61, %64 : vector<32x128xf32>
    %c2_43 = arith.constant 2 : index
    %c0_44 = arith.constant 0 : index
    %c0_45 = arith.constant 0 : index
    %66 = vector.load %arg2[%c2_43, %c0_44, %c0_45] : memref<3x128x128xf32, #tpu.memory_space<vmem>>, vector<1x128x128xf32>
    %67 = vector.shape_cast %66 : vector<1x128x128xf32> to vector<128x128xf32>
    %cst_46 = arith.constant dense<0.000000e+00> : vector<32x128xf32>
    %68 = tpu.matmul %58, %67, %cst_46 {dimension_numbers = #tpu.dot_dimension_numbers<[1], [0], [0], [1], [0, 0, 1, 1], [], []>} : vector<32x128xf32>, vector<128x128xf32>, vector<32x128xf32> -> vector<32x128xf32>
    %69 = arith.addf %65, %68 : vector<32x128xf32>
    %70 = vector.broadcast %3 : vector<1x128xf32> to vector<32x128xf32>
    %71 = arith.addf %69, %70 : vector<32x128xf32>
    %cst_47 = arith.constant dense<0.000000e+00> : vector<128xf32>
    %72 = vector.multi_reduction <add>, %71, %cst_47 [0] : vector<32x128xf32> to vector<128xf32>
    %73 = vector.shape_cast %72 : vector<128xf32> to vector<1x128xf32>
    %74 = arith.mulf %71, %71 : vector<32x128xf32>
    %cst_48 = arith.constant dense<0.000000e+00> : vector<128xf32>
    %75 = vector.multi_reduction <add>, %74, %cst_48 [0] : vector<32x128xf32> to vector<128xf32>
    %76 = vector.shape_cast %75 : vector<128xf32> to vector<1x128xf32>
    %77 = tpu.concatenate %73, %76 in 0 : vector<1x128xf32>, vector<1x128xf32> -> vector<2x128xf32>
    %cst_49 = arith.constant dense<0.000000e+00> : vector<2x128xf32>
    %78 = tpu.matmul %77, %0, %cst_49 {dimension_numbers = #tpu.dot_dimension_numbers<[1], [0], [0], [1], [0, 0, 1, 1], [], []>} : vector<2x128xf32>, vector<128x128xf32>, vector<2x128xf32> -> vector<2x128xf32>
    %cst_50 = arith.constant 5.000000e-01 : f32
    %79 = vector.broadcast %cst_50 : f32 to vector<2x128xf32>
    %80 = arith.mulf %78, %79 : vector<2x128xf32>
    %81 = vector.extract_strided_slice %80 {offsets = [0, 0], sizes = [1, 128], strides = [1, 1]} : vector<2x128xf32> to vector<1x128xf32>
    %82 = vector.extract_strided_slice %80 {offsets = [1, 0], sizes = [1, 128], strides = [1, 1]} : vector<2x128xf32> to vector<1x128xf32>
    %83 = arith.mulf %81, %81 : vector<1x128xf32>
    %84 = arith.subf %82, %83 : vector<1x128xf32>
    %cst_51 = arith.constant 0.000000e+00 : f32
    %85 = vector.broadcast %cst_51 : f32 to vector<1x128xf32>
    %86 = arith.maximumf %84, %85 : vector<1x128xf32>
    %87 = vector.broadcast %81 : vector<1x128xf32> to vector<32x128xf32>
    %88 = arith.subf %71, %87 : vector<32x128xf32>
    %cst_52 = arith.constant 9.99999974E-6 : f32
    %89 = vector.broadcast %cst_52 : f32 to vector<1x128xf32>
    %90 = arith.addf %86, %89 : vector<1x128xf32>
    %91 = math.rsqrt %90 : vector<1x128xf32>
    %92 = arith.mulf %7, %91 : vector<1x128xf32>
    %93 = vector.broadcast %92 : vector<1x128xf32> to vector<32x128xf32>
    %94 = arith.mulf %88, %93 : vector<32x128xf32>
    %95 = vector.broadcast %8 : vector<1x128xf32> to vector<32x128xf32>
    %96 = arith.addf %94, %95 : vector<32x128xf32>
    %cst_53 = arith.constant 0.000000e+00 : f32
    %97 = vector.broadcast %cst_53 : f32 to vector<32x128xf32>
    %98 = arith.maximumf %96, %97 : vector<32x128xf32>
    %99 = vector.shape_cast %98 : vector<32x128xf32> to vector<2x16x128xf32>
    %c0_54 = arith.constant 0 : index
    %c1_55 = arith.constant 1 : index
    %c0_56 = arith.constant 0 : index
    %100 = vector.load %arg7[%c0_54, %c1_55, %c0_56] : memref<2x18x128xf32, #tpu.memory_space<vmem>>, vector<2x16x128xf32>
    tpu.vector_store %arg7[%c0_54, %c1_55, %c0_56], %99 {strides = array<i32>} : memref<2x18x128xf32, #tpu.memory_space<vmem>>, vector<2x16x128xf32>,
    %c0_57 = arith.constant 0 : index
    %c0_58 = arith.constant 0 : index
    %c0_59 = arith.constant 0 : index
    %101 = vector.load %arg7[%c0_57, %c0_58, %c0_59] : memref<2x18x128xf32, #tpu.memory_space<vmem>>, vector<2x16x128xf32>
    %102 = vector.shape_cast %101 : vector<2x16x128xf32> to vector<32x128xf32>
    %c0_60 = arith.constant 0 : index
    %c2_61 = arith.constant 2 : index
    %c0_62 = arith.constant 0 : index
    %103 = vector.load %arg7[%c0_60, %c2_61, %c0_62] : memref<2x18x128xf32, #tpu.memory_space<vmem>>, vector<2x16x128xf32>
    %104 = vector.shape_cast %103 : vector<2x16x128xf32> to vector<32x128xf32>
    %c0_63 = arith.constant 0 : index
    %c0_64 = arith.constant 0 : index
    %c0_65 = arith.constant 0 : index
    %105 = vector.load %arg3[%c0_63, %c0_64, %c0_65] : memref<3x128x128xf32, #tpu.memory_space<vmem>>, vector<1x128x128xf32>
    %106 = vector.shape_cast %105 : vector<1x128x128xf32> to vector<128x128xf32>
    %cst_66 = arith.constant dense<0.000000e+00> : vector<32x128xf32>
    %107 = tpu.matmul %102, %106, %cst_66 {dimension_numbers = #tpu.dot_dimension_numbers<[1], [0], [0], [1], [0, 0, 1, 1], [], []>} : vector<32x128xf32>, vector<128x128xf32>, vector<32x128xf32> -> vector<32x128xf32>
    %c1_67 = arith.constant 1 : index
    %c0_68 = arith.constant 0 : index
    %c0_69 = arith.constant 0 : index
    %108 = vector.load %arg3[%c1_67, %c0_68, %c0_69] : memref<3x128x128xf32, #tpu.memory_space<vmem>>, vector<1x128x128xf32>
    %109 = vector.shape_cast %108 : vector<1x128x128xf32> to vector<128x128xf32>
    %cst_70 = arith.constant dense<0.000000e+00> : vector<32x128xf32>
    %110 = tpu.matmul %98, %109, %cst_70 {dimension_numbers = #tpu.dot_dimension_numbers<[1], [0], [0], [1], [0, 0, 1, 1], [], []>} : vector<32x128xf32>, vector<128x128xf32>, vector<32x128xf32> -> vector<32x128xf32>
    %111 = arith.addf %107, %110 : vector<32x128xf32>
    %c2_71 = arith.constant 2 : index
    %c0_72 = arith.constant 0 : index
    %c0_73 = arith.constant 0 : index
    %112 = vector.load %arg3[%c2_71, %c0_72, %c0_73] : memref<3x128x128xf32, #tpu.memory_space<vmem>>, vector<1x128x128xf32>
    %113 = vector.shape_cast %112 : vector<1x128x128xf32> to vector<128x128xf32>
    %cst_74 = arith.constant dense<0.000000e+00> : vector<32x128xf32>
    %114 = tpu.matmul %104, %113, %cst_74 {dimension_numbers = #tpu.dot_dimension_numbers<[1], [0], [0], [1], [0, 0, 1, 1], [], []>} : vector<32x128xf32>, vector<128x128xf32>, vector<32x128xf32> -> vector<32x128xf32>
    %115 = arith.addf %111, %114 : vector<32x128xf32>
    %116 = vector.broadcast %4 : vector<1x128xf32> to vector<32x128xf32>
    %117 = arith.addf %115, %116 : vector<32x128xf32>
    %cst_75 = arith.constant dense<0.000000e+00> : vector<128xf32>
    %118 = vector.multi_reduction <add>, %117, %cst_75 [0] : vector<32x128xf32> to vector<128xf32>
    %119 = vector.shape_cast %118 : vector<128xf32> to vector<1x128xf32>
    %120 = arith.mulf %117, %117 : vector<32x128xf32>
    %cst_76 = arith.constant dense<0.000000e+00> : vector<128xf32>
    %121 = vector.multi_reduction <add>, %120, %cst_76 [0] : vector<32x128xf32> to vector<128xf32>
    %122 = vector.shape_cast %121 : vector<128xf32> to vector<1x128xf32>
    %123 = tpu.concatenate %119, %122 in 0 : vector<1x128xf32>, vector<1x128xf32> -> vector<2x128xf32>
    %cst_77 = arith.constant dense<0.000000e+00> : vector<2x128xf32>
    %124 = tpu.matmul %123, %0, %cst_77 {dimension_numbers = #tpu.dot_dimension_numbers<[1], [0], [0], [1], [0, 0, 1, 1], [], []>} : vector<2x128xf32>, vector<128x128xf32>, vector<2x128xf32> -> vector<2x128xf32>
    %cst_78 = arith.constant 5.000000e-01 : f32
    %125 = vector.broadcast %cst_78 : f32 to vector<2x128xf32>
    %126 = arith.mulf %124, %125 : vector<2x128xf32>
    %127 = vector.extract_strided_slice %126 {offsets = [0, 0], sizes = [1, 128], strides = [1, 1]} : vector<2x128xf32> to vector<1x128xf32>
    %128 = vector.extract_strided_slice %126 {offsets = [1, 0], sizes = [1, 128], strides = [1, 1]} : vector<2x128xf32> to vector<1x128xf32>
    %129 = arith.mulf %127, %127 : vector<1x128xf32>
    %130 = arith.subf %128, %129 : vector<1x128xf32>
    %cst_79 = arith.constant 0.000000e+00 : f32
    %131 = vector.broadcast %cst_79 : f32 to vector<1x128xf32>
    %132 = arith.maximumf %130, %131 : vector<1x128xf32>
    %133 = vector.broadcast %127 : vector<1x128xf32> to vector<32x128xf32>
    %134 = arith.subf %117, %133 : vector<32x128xf32>
    %cst_80 = arith.constant 9.99999974E-6 : f32
    %135 = vector.broadcast %cst_80 : f32 to vector<1x128xf32>
    %136 = arith.addf %132, %135 : vector<1x128xf32>
    %137 = math.rsqrt %136 : vector<1x128xf32>
    %138 = arith.mulf %9, %137 : vector<1x128xf32>
    %139 = vector.broadcast %138 : vector<1x128xf32> to vector<32x128xf32>
    %140 = arith.mulf %134, %139 : vector<32x128xf32>
    %141 = vector.broadcast %10 : vector<1x128xf32> to vector<32x128xf32>
    %142 = arith.addf %140, %141 : vector<32x128xf32>
    %143 = arith.addf %142, %49 : vector<32x128xf32>
    %cst_81 = arith.constant 0.000000e+00 : f32
    %144 = vector.broadcast %cst_81 : f32 to vector<32x128xf32>
    %145 = arith.maximumf %143, %144 : vector<32x128xf32>
    %c0_82 = arith.constant 0 : index
    %c0_83 = arith.constant 0 : index
    %146 = vector.load %arg6[%c0_82, %c0_83] : memref<32x128xf32, #tpu.memory_space<vmem>>, vector<32x128xf32>
    tpu.vector_store %arg6[%c0_82, %c0_83], %145 {strides = array<i32>} : memref<32x128xf32, #tpu.memory_space<vmem>>, vector<32x128xf32>,
    return
  }
}

</mosaic_0001>

<llo_original>
// kernel: decoder_block_apply.1
$region0: #{decoder_block_apply.1}
  #allocation0 [shape = 'u32[]', space=smem, size = 0x4, offset = 0x4, fixed_abs, tag = 'smem constant byte address 0x4 - core index']
  #allocation1 [shape = 'u32[144,128]{1,0:T(1,128)}', space=vmem, size = 0x12000, scoped, tag = 'internal scratch']
  #allocation2 [shape = 'f32[2,18,128]{2,1,0:T(8,128)}', space=vmem, size = 0x6000, scoped, tag = 'scratch operand']
  %s0 = inlined_call_operand.vmem [shape: f32[2,16,32], index: 0, kind: input, shape index: {}]
  %s1 = inlined_call_operand.vmem [shape: f32[2,32,256], index: 1, kind: input, shape index: {}]
  %s2 = inlined_call_operand.vmem [shape: f32[3,128,128], index: 2, kind: input, shape index: {}]
  %s3 = inlined_call_operand.hbm [shape: f32[3,128,128], index: 3, kind: input, shape index: {}]
  %s4 = inlined_call_operand.vmem [shape: f32[128,128], index: 4, kind: input, shape index: {}]
  %s5 = inlined_call_operand.vmem [shape: f32[9,128], index: 5, kind: input, shape index: {}]
  %s6 = inlined_call_operand.vmem [shape: f32[32,128], index: 6, kind: output, shape index: {}]
  %s7 = sld [smem:[#allocation0]]
  $region38: #{decoder_block_apply.1} parent=0
    _
  %s9 = ssub.s32 1, %s7
  %s10 = scalar_select 0, %s9, %s7
  $region1: #{decoder_block_apply.1} parent=0
    #allocation3 [shape = 'u8[196608]{0}', space=vmem, size = 0x30000, scoped, tag = 'input window, operand 3, single buffered']
    #allocation4 [shape = 's32[1]{0}', space=sflag, size = 0x4, scoped, tag = 'scoped memory for decoder_block_apply.1']
    %11 = vsyncpa [#allocation4], 0
    // Predicated region
    $region2: #{decoder_block_apply.1} parent=1 // pred_check
      _
    $region3: #{decoder_block_apply.1} parent=1 // pred_check_branch
      %13 = sbr.rel (0) target = $region5
    $region4: #{decoder_block_apply.1} parent=1 // pred_region
      _
    $region5: #{decoder_block_apply.1} parent=1 // pred_fallthru
      _
    // Predicated region
    $region6: #{decoder_block_apply.1} parent=1 // pred_check
      _
    $region7: #{decoder_block_apply.1} parent=1 // pred_check_branch
      %15 = sbr.rel (0) target = $region9
    $region8: #{decoder_block_apply.1} parent=1 // pred_region
      _
    $region9: #{decoder_block_apply.1} parent=1 // pred_fallthru
      _
    // Predicated region
    $region10: #{decoder_block_apply.1} parent=1 // pred_check
      _
    $region11: #{decoder_block_apply.1} parent=1 // pred_check_branch
      %17 = sbr.rel (0) target = $region13
    $region12: #{decoder_block_apply.1} parent=1 // pred_region
      _
    $region13: #{decoder_block_apply.1} parent=1 // pred_fallthru
      _
    // Predicated region
    $region14: #{decoder_block_apply.1} parent=1 // pred_check
      _
    $region15: #{decoder_block_apply.1} parent=1 // pred_check_branch
      %19 = sbr.rel (0) target = $region17
    $region16: #{decoder_block_apply.1} parent=1 // pred_region
      %s21 = ssub.s32 6144, 6144
      %22 = vsyncadd [#allocation4], %s21
      %s23 = sshll.u32 [#allocation3], 4
      %s24 = int_to_ptr.vmem [resolvable:$true] %s23
      %29 = dma.hbm_to_vmem [thread:$0]  %s3, 6144, %s24, [#allocation4], 128, 128, 8
    $region17: #{decoder_block_apply.1} parent=1 // pred_fallthru
      _
    // Predicated region
    $region18: #{decoder_block_apply.1} parent=1 // pred_check
      _
    $region19: #{decoder_block_apply.1} parent=1 // pred_check_branch
      %31 = sbr.rel (0) target = $region21
    $region20: #{decoder_block_apply.1} parent=1 // pred_region
      _
    $region21: #{decoder_block_apply.1} parent=1 // pred_fallthru
      _
    // Predicated region
    $region22: #{decoder_block_apply.1} parent=1 // pred_check
      _
    $region23: #{decoder_block_apply.1} parent=1 // pred_check_branch
      %33 = sbr.rel (0) target = $region25
    $region24: #{decoder_block_apply.1} parent=1 // pred_region
      _
    $region25: #{decoder_block_apply.1} parent=1 // pred_fallthru
      _
    // Predicated region
    $region26: #{decoder_block_apply.1} parent=1 // pred_check
      _
    $region27: #{decoder_block_apply.1} parent=1 // pred_check_branch
      %35 = sbr.rel (0) target = $region29
    $region28: #{decoder_block_apply.1} parent=1 // pred_region
      %36 = dma.done [#allocation4], 6144
    $region29: #{decoder_block_apply.1} parent=1 // pred_fallthru
      _
    %v37 = vld [vmem:[%s4] sm:$0xff]
    %v38 = vld [vmem:[%s4 + $0x8] sm:$0xff]
    %v39 = vld [vmem:[%s4 + $0x10] sm:$0xff]
    %v40 = vld [vmem:[%s4 + $0x18] sm:$0xff]
    %v41 = vld [vmem:[%s4 + $0x20] sm:$0xff]
    %v42 = vld [vmem:[%s4 + $0x28] sm:$0xff]
    %v43 = vld [vmem:[%s4 + $0x30] sm:$0xff]
    %v44 = vld [vmem:[%s4 + $0x38] sm:$0xff]
    %v45 = vld [vmem:[%s4 + $0x40] sm:$0xff]
    %v46 = vld [vmem:[%s4 + $0x48] sm:$0xff]
    %v47 = vld [vmem:[%s4 + $0x50] sm:$0xff]
    %v48 = vld [vmem:[%s4 + $0x58] sm:$0xff]
    %v49 = vld [vmem:[%s4 + $0x60] sm:$0xff]
    %v50 = vld [vmem:[%s4 + $0x68] sm:$0xff]
    %v51 = vld [vmem:[%s4 + $0x70] sm:$0xff]
    %v52 = vld [vmem:[%s4 + $0x78] sm:$0xff]
    %v53 = vld [vmem:[%s5] sm:$0xff]
    %v54 = vld [vmem:[%s5 + $0x8] sm:$0x1]
    %v55 = vld [vmem:[%s0] sm:$0xff]
    %v56 = vld [vmem:[%s0 + $0x8] sm:$0xff]
    %v57 = vld [vmem:[%s1] sm:$0xff]
    %v58 = vld [vmem:[%s1 + $0x8] sm:$0xff]
    %v59 = vld [vmem:[%s1 + $0x10] sm:$0xff]
    %v60 = vld [vmem:[%s1 + $0x18] sm:$0xff]
    %v61 = vld [vmem:[%s1 + $0x20] sm:$0xff]
    %v62 = vld [vmem:[%s1 + $0x28] sm:$0xff]
    %v63 = vld [vmem:[%s1 + $0x30] sm:$0xff]
    %v64 = vld [vmem:[%s1 + $0x38] sm:$0xff]
    %s65 = scalar_lea.vmem %s0, 16
    %v66 = vld [vmem:[%s65] sm:$0xff]
    %v67 = vld [vmem:[%s65 + $0x8] sm:$0xff]
    %s68 = scalar_lea.vmem %s1, 64
    %v69 = vld [vmem:[%s68] sm:$0xff]
    %v70 = vld [vmem:[%s68 + $0x8] sm:$0xff]
    %v71 = vld [vmem:[%s68 + $0x10] sm:$0xff]
    %v72 = vld [vmem:[%s68 + $0x18] sm:$0xff]
    %v73 = vld [vmem:[%s68 + $0x20] sm:$0xff]
    %v74 = vld [vmem:[%s68 + $0x28] sm:$0xff]
    %v75 = vld [vmem:[%s68 + $0x30] sm:$0xff]
    %v76 = vld [vmem:[%s68 + $0x38] sm:$0xff]
    %vm77 = vcmask 261120
    %v79 = vsel %vm77, %v66, 0
    %v82 = vsel %vm77, %v67, 0
    %84 = vmatprep.subr.mxu0 %v70
    %85 = vmatpush1.msra.mxu0 %v69
    %86 = vmatprep.subr.mxu0 %v72
    %87 = vmatpush1.msra.mxu0 %v71
    %88 = vmatprep.subr.mxu0 %v74
    %89 = vmatpush1.msra.mxu0 %v73
    %90 = vmatprep.subr.mxu0 %v76
    %91 = vmatpush1.msra.mxu0 %v75
    %92 = vmatprep.subr.mxu0 0.0
    %93 = vmatpush1.msra.mxu0 0.0
    %94 = vmatprep.subr.mxu0 0.0
    %95 = vmatpush1.msra.mxu0 0.0
    %96 = vmatprep.subr.mxu0 0.0
    %97 = vmatpush1.msra.mxu0 0.0
    %98 = vmatprep.subr.mxu0 0.0
    %99 = vmatpush1.msra.mxu0 0.0
    %100 = vmatprep.subr.mxu0 0.0
    %101 = vmatpush1.msra.mxu0 0.0
    %102 = vmatprep.subr.mxu0 0.0
    %103 = vmatpush1.msra.mxu0 0.0
    %104 = vmatprep.subr.mxu0 0.0
    %105 = vmatpush1.msra.mxu0 0.0
    %106 = vmatprep.subr.mxu0 0.0
    %107 = vmatpush1.msra.mxu0 0.0
    %108 = vmatprep.subr.mxu0 0.0
    %109 = vmatpush1.msra.mxu0 0.0
    %110 = vmatprep.subr.mxu0 0.0
    %111 = vmatpush1.msra.mxu0 0.0
    %112 = vmatprep.subr.mxu0 0.0
    %113 = vmatpush1.msra.mxu0 0.0
    %114 = vmatprep.subr.mxu0 0.0
    %115 = vmatpush1.msra.mxu0 0.0
    %116 = vmatprep.subr.mxu0 0.0
    %117 = vmatpush1.msra.mxu0 0.0
    %118 = vmatprep.subr.mxu0 0.0
    %119 = vmatpush1.msra.mxu0 0.0
    %120 = vmatprep.subr.mxu0 0.0
    %121 = vmatpush1.msra.mxu0 0.0
    %122 = vmatprep.subr.mxu0 0.0
    %123 = vmatpush1.msra.mxu0 0.0
    %124 = vmatprep.subr.mxu0 0.0
    %125 = vmatpush1.msra.mxu0 0.0
    %126 = vmatprep.subr.mxu0 0.0
    %127 = vmatpush1.msra.mxu0 0.0
    %128 = vmatprep.subr.mxu0 0.0
    %129 = vmatpush1.msra.mxu0 0.0
    %130 = vmatprep.subr.mxu0 0.0
    %131 = vmatpush1.msra.mxu0 0.0
    %132 = vmatprep.subr.mxu0 0.0
    %133 = vmatpush1.msra.mxu0 0.0
    %134 = vmatprep.subr.mxu0 0.0
    %135 = vmatpush1.msra.mxu0 0.0
    %136 = vmatprep.subr.mxu0 0.0
    %137 = vmatpush1.msra.mxu0 0.0
    %138 = vmatprep.subr.mxu0 0.0
    %139 = vmatpush1.msra.mxu0 0.0
    %140 = vmatprep.subr.mxu0 0.0
    %141 = vmatpush1.msra.mxu0 0.0
    %142 = vmatprep.subr.mxu0 0.0
    %143 = vmatpush1.msra.mxu0 0.0
    %144 = vmatprep.subr.mxu0 0.0
    %145 = vmatpush1.msra.mxu0 0.0
    %146 = vmatprep.subr.mxu0 0.0
    %147 = vmatpush1.msra.mxu0 0.0
    %148 = vmatprep.mubr.f32.mxu0 0.0
    %149 = vmatmul.mubr.f32.gmra.mrb[0].mxu0 %v79
    %v150 = vpop.f32.mrb[0].mxu0
    %v151 = vadd.f32 0.0, %v150
    %v152 = vpop.f32.mrb[0].mxu0
    %v153 = vadd.f32 0.0, %v152
    %154 = vmatprep.mubr.f32.mxu0 0.0
    %155 = vmatmul.mubr.f32.gmra.mrb[0].mxu0 %v82
    %v156 = vpop.f32.mrb[0].mxu0
    %v157 = vadd.f32 0.0, %v156
    %v158 = vpop.f32.mrb[0].mxu0
    %v159 = vadd.f32 0.0, %v158
    %160 = vdwg.mxu0
    %v162 = vsel %vm77, %v55, 0
    %v165 = vsel %vm77, %v56, 0
    %167 = vmatprep.subr.mxu0 %v58
    %168 = vmatpush1.msra.mxu0 %v57
    %169 = vmatprep.subr.mxu0 %v60
    %170 = vmatpush1.msra.mxu0 %v59
    %171 = vmatprep.subr.mxu0 %v62
    %172 = vmatpush1.msra.mxu0 %v61
    %173 = vmatprep.subr.mxu0 %v64
    %174 = vmatpush1.msra.mxu0 %v63
    %175 = vmatprep.subr.mxu0 0.0
    %176 = vmatpush1.msra.mxu0 0.0
    %177 = vmatprep.subr.mxu0 0.0
    %178 = vmatpush1.msra.mxu0 0.0
    %179 = vmatprep.subr.mxu0 0.0
    %180 = vmatpush1.msra.mxu0 0.0
    %181 = vmatprep.subr.mxu0 0.0
    %182 = vmatpush1.msra.mxu0 0.0
    %183 = vmatprep.subr.mxu0 0.0
    %184 = vmatpush1.msra.mxu0 0.0
    %185 = vmatprep.subr.mxu0 0.0
    %186 = vmatpush1.msra.mxu0 0.0
    %187 = vmatprep.subr.mxu0 0.0
    %188 = vmatpush1.msra.mxu0 0.0
    %189 = vmatprep.subr.mxu0 0.0
    %190 = vmatpush1.msra.mxu0 0.0
    %191 = vmatprep.subr.mxu0 0.0
    %192 = vmatpush1.msra.mxu0 0.0
    %193 = vmatprep.subr.mxu0 0.0
    %194 = vmatpush1.msra.mxu0 0.0
    %195 = vmatprep.subr.mxu0 0.0
    %196 = vmatpush1.msra.mxu0 0.0
    %197 = vmatprep.subr.mxu0 0.0
    %198 = vmatpush1.msra.mxu0 0.0
    %199 = vmatprep.subr.mxu0 0.0
    %200 = vmatpush1.msra.mxu0 0.0
    %201 = vmatprep.subr.mxu0 0.0
    %202 = vmatpush1.msra.mxu0 0.0
    %203 = vmatprep.subr.mxu0 0.0
    %204 = vmatpush1.msra.mxu0 0.0
    %205 = vmatprep.subr.mxu0 0.0
    %206 = vmatpush1.msra.mxu0 0.0
    %207 = vmatprep.subr.mxu0 0.0
    %208 = vmatpush1.msra.mxu0 0.0
    %209 = vmatprep.subr.mxu0 0.0
    %210 = vmatpush1.msra.mxu0 0.0
    %211 = vmatprep.subr.mxu0 0.0
    %212 = vmatpush1.msra.mxu0 0.0
    %213 = vmatprep.subr.mxu0 0.0
    %214 = vmatpush1.msra.mxu0 0.0
    %215 = vmatprep.subr.mxu0 0.0
    %216 = vmatpush1.msra.mxu0 0.0
    %217 = vmatprep.subr.mxu0 0.0
    %218 = vmatpush1.msra.mxu0 0.0
    %219 = vmatprep.subr.mxu0 0.0
    %220 = vmatpush1.msra.mxu0 0.0
    %221 = vmatprep.subr.mxu0 0.0
    %222 = vmatpush1.msra.mxu0 0.0
    %223 = vmatprep.subr.mxu0 0.0
    %224 = vmatpush1.msra.mxu0 0.0
    %225 = vmatprep.subr.mxu0 0.0
    %226 = vmatpush1.msra.mxu0 0.0
    %227 = vmatprep.subr.mxu0 0.0
    %228 = vmatpush1.msra.mxu0 0.0
    %229 = vmatprep.subr.mxu0 0.0
    %230 = vmatpush1.msra.mxu0 0.0
    %231 = vmatprep.mubr.f32.mxu0 0.0
    %232 = vmatmul.mubr.f32.gmra.mrb[0].mxu0 %v162
    %v233 = vpop.f32.mrb[0].mxu0
    %v234 = vadd.f32 %v151, %v233
    %v235 = vpop.f32.mrb[0].mxu0
    %v236 = vadd.f32 %v153, %v235
    %237 = vmatprep.mubr.f32.mxu0 0.0
    %238 = vmatmul.mubr.f32.gmra.mrb[0].mxu0 %v165
    %v239 = vpop.f32.mrb[0].mxu0
    %v240 = vadd.f32 %v157, %v239
    %v241 = vpop.f32.mrb[0].mxu0
    %v242 = vadd.f32 %v159, %v241
    %243 = vdwg.mxu0
    %v248 = vcombine.low %v234, %v236
    %v249 = vcombine.high %v234, %v236
    %v250 = vcombine.low %v240, %v242
    %v251 = vcombine.high %v240, %v242
    %v257 = vunpack.c.l.s4 1935823168
    %v258 = vunpack.c.0.s8 %v257
    %v259 = vlaneseq
    %v260 = vshrl.u32 %v259, 7
    %v261 = vsub.s32 %v258, %v260
    %v262 = vrot.slane %v248, %v261
    %v264 = vunpack.c.l.s4 1935823168
    %v265 = vunpack.c.0.s8 %v264
    %v266 = vlaneseq
    %v267 = vshrl.u32 %v266, 7
    %v268 = vsub.s32 %v265, %v267
    %v269 = vrot.slane %v249, %v268
    %v271 = vunpack.c.l.s4 1935823168
    %v272 = vunpack.c.0.s8 %v271
    %v273 = vlaneseq
    %v274 = vshrl.u32 %v273, 7
    %v275 = vsub.s32 %v272, %v274
    %v276 = vrot.slane %v250, %v275
    %v278 = vunpack.c.l.s4 1935823168
    %v279 = vunpack.c.0.s8 %v278
    %v280 = vlaneseq
    %v281 = vshrl.u32 %v280, 7
    %v282 = vsub.s32 %v279, %v281
    %v283 = vrot.slane %v251, %v282
    %v284 = vlaneseq
    %v285 = vshrl.u32 %v284, 7
    %v286 = vsub.s32 0, %v285
    %v287 = vrot.slane %v53, %v286
    %v288 = vadd.f32 %v262, %v287
    %v289 = vadd.f32 %v269, %v287
    %v290 = vadd.f32 %v276, %v287
    %v291 = vadd.f32 %v283, %v287
    %v292 = vadd.f32 %v288, %v289
    %v293 = vadd.f32 %v292, %v290
    %v294 = vadd.f32 %v293, %v291
    %v295 = vrot.slane %v294, 4
    %v296 = vadd.f32 %v294, %v295
    %v297 = vrot.slane %v296, 2
    %v298 = vadd.f32 %v296, %v297
    %v299 = vrot.slane %v298, 1
    %v300 = vadd.f32 %v298, %v299
    %v301 = vmul.f32 %v288, %v288
    %v302 = vmul.f32 %v289, %v289
    %v303 = vmul.f32 %v290, %v290
    %v304 = vmul.f32 %v291, %v291
    %v305 = vadd.f32 %v301, %v302
    %v306 = vadd.f32 %v305, %v303
    %v307 = vadd.f32 %v306, %v304
    %v308 = vrot.slane %v307, 4
    %v309 = vadd.f32 %v307, %v308
    %v310 = vrot.slane %v309, 2
    %v311 = vadd.f32 %v309, %v310
    %v312 = vrot.slane %v311, 1
    %v313 = vadd.f32 %v311, %v312
    %vm314 = vcmask 1040384
    %v315 = vsel %vm314, %v300, %v313
    %316 = vmatprep.subr.mxu0 0.0
    %317 = vmatpush1.msra.mxu0 %v37
    %318 = vmatprep.subr.mxu0 0.0
    %319 = vmatpush1.msra.mxu0 %v38
    %320 = vmatprep.subr.mxu0 0.0
    %321 = vmatpush1.msra.mxu0 %v39
    %322 = vmatprep.subr.mxu0 0.0
    %323 = vmatpush1.msra.mxu0 %v40
    %324 = vmatprep.subr.mxu0 0.0
    %325 = vmatpush1.msra.mxu0 %v41
    %326 = vmatprep.subr.mxu0 0.0
    %327 = vmatpush1.msra.mxu0 %v42
    %328 = vmatprep.subr.mxu0 0.0
    %329 = vmatpush1.msra.mxu0 %v43
    %330 = vmatprep.subr.mxu0 0.0
    %331 = vmatpush1.msra.mxu0 %v44
    %332 = vmatprep.subr.mxu0 0.0
    %333 = vmatpush1.msra.mxu0 %v45
    %334 = vmatprep.subr.mxu0 0.0
    %335 = vmatpush1.msra.mxu0 %v46
    %336 = vmatprep.subr.mxu0 0.0
    %337 = vmatpush1.msra.mxu0 %v47
    %338 = vmatprep.subr.mxu0 0.0
    %339 = vmatpush1.msra.mxu0 %v48
    %340 = vmatprep.subr.mxu0 0.0
    %341 = vmatpush1.msra.mxu0 %v49
    %342 = vmatprep.subr.mxu0 0.0
    %343 = vmatpush1.msra.mxu0 %v50
    %344 = vmatprep.subr.mxu0 0.0
    %345 = vmatpush1.msra.mxu0 %v51
    %346 = vmatprep.subr.mxu0 0.0
    %347 = vmatpush1.msra.mxu0 %v52
    %348 = vmatprep.subr.mxu0 0.0
    %349 = vmatpush1.msra.mxu0 0.0
    %350 = vmatprep.subr.mxu0 0.0
    %351 = vmatpush1.msra.mxu0 0.0
    %352 = vmatprep.subr.mxu0 0.0
    %353 = vmatpush1.msra.mxu0 0.0
    %354 = vmatprep.subr.mxu0 0.0
    %355 = vmatpush1.msra.mxu0 0.0
    %356 = vmatprep.subr.mxu0 0.0
    %357 = vmatpush1.msra.mxu0 0.0
    %358 = vmatprep.subr.mxu0 0.0
    %359 = vmatpush1.msra.mxu0 0.0
    %360 = vmatprep.subr.mxu0 0.0
    %361 = vmatpush1.msra.mxu0 0.0
    %362 = vmatprep.subr.mxu0 0.0
    %363 = vmatpush1.msra.mxu0 0.0
    %364 = vmatprep.subr.mxu0 0.0
    %365 = vmatpush1.msra.mxu0 0.0
    %366 = vmatprep.subr.mxu0 0.0
    %367 = vmatpush1.msra.mxu0 0.0
    %368 = vmatprep.subr.mxu0 0.0
    %369 = vmatpush1.msra.mxu0 0.0
    %370 = vmatprep.subr.mxu0 0.0
    %371 = vmatpush1.msra.mxu0 0.0
    %372 = vmatprep.subr.mxu0 0.0
    %373 = vmatpush1.msra.mxu0 0.0
    %374 = vmatprep.subr.mxu0 0.0
    %375 = vmatpush1.msra.mxu0 0.0
    %376 = vmatprep.subr.mxu0 0.0
    %377 = vmatpush1.msra.mxu0 0.0
    %378 = vmatprep.subr.mxu0 0.0
    %379 = vmatpush1.msra.mxu0 0.0
    %380 = vmatprep.mubr.f32.mxu0 0.0
    %381 = vmatmul.mubr.f32.gmra.mrb[0].mxu0 %v315
    %v382 = vpop.f32.mrb[0].mxu0
    %v383 = vadd.f32 0.0, %v382
    %v384 = vpop.f32.mrb[0].mxu0
    %385 = vdwg.mxu0
    %v386 = vmul.f32 %v383, 0.5
    %v387 = vmul.f32 %v386, %v386
    %v389 = vrot.slane %v387, 7
    %v391 = vsub.f32 %v386, %v389
    %v392 = vmax.f32 %v391, 0.0
    %v393 = vlaneseq
    %v394 = vshrl.u32 %v393, 7
    %v395 = vsub.s32 0, %v394
    %v396 = vrot.slane %v386, %v395
    %v397 = vsub.f32 %v288, %v396
    %v398 = vsub.f32 %v289, %v396
    %v399 = vsub.f32 %v290, %v396
    %v400 = vsub.f32 %v291, %v396
    %v401 = vadd.f32 %v392, 1e-05
    %v402 = vrsqrt.pop %v401
    %v404 = vrot.slane %v402, 6
    %v406 = vmul.f32 %v53, %v404
    %v407 = vlaneseq
    %v408 = vshrl.u32 %v407, 7
    %v409 = vsub.s32 3, %v408
    %v410 = vrot.slane %v406, %v409
    %v411 = vmul.f32 %v397, %v410
    %v412 = vmul.f32 %v398, %v410
    %v413 = vmul.f32 %v399, %v410
    %v414 = vmul.f32 %v400, %v410
    %v415 = vlaneseq
    %v416 = vshrl.u32 %v415, 7
    %v417 = vsub.s32 4, %v416
    %v418 = vrot.slane %v53, %v417
    %v419 = vadd.f32 %v411, %v418
    %v420 = vadd.f32 %v412, %v418
    %v421 = vadd.f32 %v413, %v418
    %v422 = vadd.f32 %v414, %v418
    %423 = vst [vmem:[#allocation2] sm:$0x1] 0.0
    %424 = vst [vmem:[#allocation2 + $0x18] sm:$0x1] 0.0
    %425 = vst [vmem:[#allocation2 + $0x11] sm:$0x1] 0.0
    %426 = vst [vmem:[#allocation2 + $0x29] sm:$0x1] 0.0
    %427 = vst [vmem:[#allocation2 + $0x1] sm:$0xff] %v419
    %428 = vst [vmem:[#allocation2 + $0x9] sm:$0xff] %v420
    %429 = vst [vmem:[#allocation2 + $0x19] sm:$0xff] %v421
    %430 = vst [vmem:[#allocation2 + $0x21] sm:$0xff] %v422
    %v431 = vld [vmem:[#allocation2] sm:$0xff]
    %v432 = vld [vmem:[#allocation2 + $0x8] sm:$0xff]
    %v433 = vld [vmem:[#allocation2 + $0x18] sm:$0xff]
    %v434 = vld [vmem:[#allocation2 + $0x20] sm:$0xff]
    %v435 = vld [vmem:[#allocation2 + $0x2] sm:$0xff]
    %v436 = vld [vmem:[#allocation2 + $0xa] sm:$0xff]
    %v437 = vld [vmem:[#allocation2 + $0x1a] sm:$0xff]
    %v438 = vld [vmem:[#allocation2 + $0x22] sm:$0xff]
    %v439 = vld [vmem:[%s2] sm:$0xff]
    %v440 = vld [vmem:[%s2 + $0x8] sm:$0xff]
    %v441 = vld [vmem:[%s2 + $0x10] sm:$0xff]
    %v442 = vld [vmem:[%s2 + $0x18] sm:$0xff]
    %v443 = vld [vmem:[%s2 + $0x20] sm:$0xff]
    %v444 = vld [vmem:[%s2 + $0x28] sm:$0xff]
    %v445 = vld [vmem:[%s2 + $0x30] sm:$0xff]
    %v446 = vld [vmem:[%s2 + $0x38] sm:$0xff]
    %v447 = vld [vmem:[%s2 + $0x40] sm:$0xff]
    %v448 = vld [vmem:[%s2 + $0x48] sm:$0xff]
    %v449 = vld [vmem:[%s2 + $0x50] sm:$0xff]
    %v450 = vld [vmem:[%s2 + $0x58] sm:$0xff]
    %v451 = vld [vmem:[%s2 + $0x60] sm:$0xff]
    %v452 = vld [vmem:[%s2 + $0x68] sm:$0xff]
    %v453 = vld [vmem:[%s2 + $0x70] sm:$0xff]
    %v454 = vld [vmem:[%s2 + $0x78] sm:$0xff]
    %s455 = scalar_lea.vmem %s2, 128
    %v456 = vld [vmem:[%s455] sm:$0xff]
    %v457 = vld [vmem:[%s455 + $0x8] sm:$0xff]
    %v458 = vld [vmem:[%s455 + $0x10] sm:$0xff]
    %v459 = vld [vmem:[%s455 + $0x18] sm:$0xff]
    %v460 = vld [vmem:[%s455 + $0x20] sm:$0xff]
    %v461 = vld [vmem:[%s455 + $0x28] sm:$0xff]
    %v462 = vld [vmem:[%s455 + $0x30] sm:$0xff]
    %v463 = vld [vmem:[%s455 + $0x38] sm:$0xff]
    %v464 = vld [vmem:[%s455 + $0x40] sm:$0xff]
    %v465 = vld [vmem:[%s455 + $0x48] sm:$0xff]
    %v466 = vld [vmem:[%s455 + $0x50] sm:$0xff]
    %v467 = vld [vmem:[%s455 + $0x58] sm:$0xff]
    %v468 = vld [vmem:[%s455 + $0x60] sm:$0xff]
    %v469 = vld [vmem:[%s455 + $0x68] sm:$0xff]
    %v470 = vld [vmem:[%s455 + $0x70] sm:$0xff]
    %v471 = vld [vmem:[%s455 + $0x78] sm:$0xff]
    %472 = vmatprep.subr.mxu0 0.0
    %473 = vmatpush1.msra.mxu0 %v456
    %474 = vmatprep.subr.mxu0 0.0
    %475 = vmatpush1.msra.mxu0 %v457
    %476 = vmatprep.subr.mxu0 0.0
    %477 = vmatpush1.msra.mxu0 %v458
    %478 = vmatprep.subr.mxu0 0.0
    %479 = vmatpush1.msra.mxu0 %v459
    %480 = vmatprep.subr.mxu0 0.0
    %481 = vmatpush1.msra.mxu0 %v460
    %482 = vmatprep.subr.mxu0 0.0
    %483 = vmatpush1.msra.mxu0 %v461
    %484 = vmatprep.subr.mxu0 0.0
    %485 = vmatpush1.msra.mxu0 %v462
    %486 = vmatprep.subr.mxu0 0.0
    %487 = vmatpush1.msra.mxu0 %v463
    %488 = vmatprep.subr.mxu0 0.0
    %489 = vmatpush1.msra.mxu0 %v464
    %490 = vmatprep.subr.mxu0 0.0
    %491 = vmatpush1.msra.mxu0 %v465
    %492 = vmatprep.subr.mxu0 0.0
    %493 = vmatpush1.msra.mxu0 %v466
    %494 = vmatprep.subr.mxu0 0.0
    %495 = vmatpush1.msra.mxu0 %v467
    %496 = vmatprep.subr.mxu0 0.0
    %497 = vmatpush1.msra.mxu0 %v468
    %498 = vmatprep.subr.mxu0 0.0
    %499 = vmatpush1.msra.mxu0 %v469
    %500 = vmatprep.subr.mxu0 0.0
    %501 = vmatpush1.msra.mxu0 %v470
    %502 = vmatprep.subr.mxu0 0.0
    %503 = vmatpush1.msra.mxu0 %v471
    %504 = vmatprep.subr.mxu0 0.0
    %505 = vmatpush1.msra.mxu0 0.0
    %506 = vmatprep.subr.mxu0 0.0
    %507 = vmatpush1.msra.mxu0 0.0
    %508 = vmatprep.subr.mxu0 0.0
    %509 = vmatpush1.msra.mxu0 0.0
    %510 = vmatprep.subr.mxu0 0.0
    %511 = vmatpush1.msra.mxu0 0.0
    %512 = vmatprep.subr.mxu0 0.0
    %513 = vmatpush1.msra.mxu0 0.0
    %514 = vmatprep.subr.mxu0 0.0
    %515 = vmatpush1.msra.mxu0 0.0
    %516 = vmatprep.subr.mxu0 0.0
    %517 = vmatpush1.msra.mxu0 0.0
    %518 = vmatprep.subr.mxu0 0.0
    %519 = vmatpush1.msra.mxu0 0.0
    %520 = vmatprep.subr.mxu0 0.0
    %521 = vmatpush1.msra.mxu0 0.0
    %522 = vmatprep.subr.mxu0 0.0
    %523 = vmatpush1.msra.mxu0 0.0
    %524 = vmatprep.subr.mxu0 0.0
    %525 = vmatpush1.msra.mxu0 0.0
    %526 = vmatprep.subr.mxu0 0.0
    %527 = vmatpush1.msra.mxu0 0.0
    %528 = vmatprep.subr.mxu0 0.0
    %529 = vmatpush1.msra.mxu0 0.0
    %530 = vmatprep.subr.mxu0 0.0
    %531 = vmatpush1.msra.mxu0 0.0
    %532 = vmatprep.subr.mxu0 0.0
    %533 = vmatpush1.msra.mxu0 0.0
    %534 = vmatprep.subr.mxu0 0.0
    %535 = vmatpush1.msra.mxu0 0.0
    %536 = vmatprep.mubr.f32.mxu0 0.0
    %537 = vmatmul.mubr.f32.gmra.mrb[0].mxu0 %v419
    %v538 = vpop.f32.mrb[0].mxu0
    %v539 = vadd.f32 0.0, %v538
    %v540 = vpop.f32.mrb[0].mxu0
    %541 = vmatprep.mubr.f32.mxu0 0.0
    %542 = vmatmul.mubr.f32.gmra.mrb[0].mxu0 %v420
    %v543 = vpop.f32.mrb[0].mxu0
    %v544 = vadd.f32 0.0, %v543
    %v545 = vpop.f32.mrb[0].mxu0
    %546 = vmatprep.mubr.f32.mxu0 0.0
    %547 = vmatmul.mubr.f32.gmra.mrb[0].mxu0 %v421
    %v548 = vpop.f32.mrb[0].mxu0
    %v549 = vadd.f32 0.0, %v548
    %v550 = vpop.f32.mrb[0].mxu0
    %551 = vmatprep.mubr.f32.mxu0 0.0
    %552 = vmatmul.mubr.f32.gmra.mrb[0].mxu0 %v422
    %v553 = vpop.f32.mrb[0].mxu0
    %v554 = vadd.f32 0.0, %v553
    %v555 = vpop.f32.mrb[0].mxu0
    %556 = vdwg.mxu0
    %557 = vmatprep.subr.mxu0 0.0
    %558 = vmatpush1.msra.mxu0 %v439
    %559 = vmatprep.subr.mxu0 0.0
    %560 = vmatpush1.msra.mxu0 %v440
    %561 = vmatprep.subr.mxu0 0.0
    %562 = vmatpush1.msra.mxu0 %v441
    %563 = vmatprep.subr.mxu0 0.0
    %564 = vmatpush1.msra.mxu0 %v442
    %565 = vmatprep.subr.mxu0 0.0
    %566 = vmatpush1.msra.mxu0 %v443
    %567 = vmatprep.subr.mxu0 0.0
    %568 = vmatpush1.msra.mxu0 %v444
    %569 = vmatprep.subr.mxu0 0.0
    %570 = vmatpush1.msra.mxu0 %v445
    %571 = vmatprep.subr.mxu0 0.0
    %572 = vmatpush1.msra.mxu0 %v446
    %573 = vmatprep.subr.mxu0 0.0
    %574 = vmatpush1.msra.mxu0 %v447
    %575 = vmatprep.subr.mxu0 0.0
    %576 = vmatpush1.msra.mxu0 %v448
    %577 = vmatprep.subr.mxu0 0.0
    %578 = vmatpush1.msra.mxu0 %v449
    %579 = vmatprep.subr.mxu0 0.0
    %580 = vmatpush1.msra.mxu0 %v450
    %581 = vmatprep.subr.mxu0 0.0
    %582 = vmatpush1.msra.mxu0 %v451
    %583 = vmatprep.subr.mxu0 0.0
    %584 = vmatpush1.msra.mxu0 %v452
    %585 = vmatprep.subr.mxu0 0.0
    %586 = vmatpush1.msra.mxu0 %v453
    %587 = vmatprep.subr.mxu0 0.0
    %588 = vmatpush1.msra.mxu0 %v454
    %589 = vmatprep.subr.mxu0 0.0
    %590 = vmatpush1.msra.mxu0 0.0
    %591 = vmatprep.subr.mxu0 0.0
    %592 = vmatpush1.msra.mxu0 0.0
    %593 = vmatprep.subr.mxu0 0.0
    %594 = vmatpush1.msra.mxu0 0.0
    %595 = vmatprep.subr.mxu0 0.0
    %596 = vmatpush1.msra.mxu0 0.0
    %597 = vmatprep.subr.mxu0 0.0
    %598 = vmatpush1.msra.mxu0 0.0
    %599 = vmatprep.subr.mxu0 0.0
    %600 = vmatpush1.msra.mxu0 0.0
    %601 = vmatprep.subr.mxu0 0.0
    %602 = vmatpush1.msra.mxu0 0.0
    %603 = vmatprep.subr.mxu0 0.0
    %604 = vmatpush1.msra.mxu0 0.0
    %605 = vmatprep.subr.mxu0 0.0
    %606 = vmatpush1.msra.mxu0 0.0
    %607 = vmatprep.subr.mxu0 0.0
    %608 = vmatpush1.msra.mxu0 0.0
    %609 = vmatprep.subr.mxu0 0.0
    %610 = vmatpush1.msra.mxu0 0.0
    %611 = vmatprep.subr.mxu0 0.0
    %612 = vmatpush1.msra.mxu0 0.0
    %613 = vmatprep.subr.mxu0 0.0
    %614 = vmatpush1.msra.mxu0 0.0
    %615 = vmatprep.subr.mxu0 0.0
    %616 = vmatpush1.msra.mxu0 0.0
    %617 = vmatprep.subr.mxu0 0.0
    %618 = vmatpush1.msra.mxu0 0.0
    %619 = vmatprep.subr.mxu0 0.0
    %620 = vmatpush1.msra.mxu0 0.0
    %621 = vmatprep.mubr.f32.mxu0 0.0
    %622 = vmatmul.mubr.f32.gmra.mrb[0].mxu0 %v431
    %v623 = vpop.f32.mrb[0].mxu0
    %v624 = vadd.f32 %v539, %v623
    %v625 = vpop.f32.mrb[0].mxu0
    %626 = vmatprep.mubr.f32.mxu0 0.0
    %627 = vmatmul.mubr.f32.gmra.mrb[0].mxu0 %v432
    %v628 = vpop.f32.mrb[0].mxu0
    %v629 = vadd.f32 %v544, %v628
    %v630 = vpop.f32.mrb[0].mxu0
    %631 = vmatprep.mubr.f32.mxu0 0.0
    %632 = vmatmul.mubr.f32.gmra.mrb[0].mxu0 %v433
    %v633 = vpop.f32.mrb[0].mxu0
    %v634 = vadd.f32 %v549, %v633
    %v635 = vpop.f32.mrb[0].mxu0
    %636 = vmatprep.mubr.f32.mxu0 0.0
    %637 = vmatmul.mubr.f32.gmra.mrb[0].mxu0 %v434
    %v638 = vpop.f32.mrb[0].mxu0
    %v639 = vadd.f32 %v554, %v638
    %v640 = vpop.f32.mrb[0].mxu0
    %641 = vdwg.mxu0
    %s642 = scalar_lea.vmem %s2, 256
    %v643 = vld [vmem:[%s642] sm:$0xff]
    %v644 = vld [vmem:[%s642 + $0x8] sm:$0xff]
    %v645 = vld [vmem:[%s642 + $0x10] sm:$0xff]
    %v646 = vld [vmem:[%s642 + $0x18] sm:$0xff]
    %v647 = vld [vmem:[%s642 + $0x20] sm:$0xff]
    %v648 = vld [vmem:[%s642 + $0x28] sm:$0xff]
    %v649 = vld [vmem:[%s642 + $0x30] sm:$0xff]
    %v650 = vld [vmem:[%s642 + $0x38] sm:$0xff]
    %v651 = vld [vmem:[%s642 + $0x40] sm:$0xff]
    %v652 = vld [vmem:[%s642 + $0x48] sm:$0xff]
    %v653 = vld [vmem:[%s642 + $0x50] sm:$0xff]
    %v654 = vld [vmem:[%s642 + $0x58] sm:$0xff]
    %v655 = vld [vmem:[%s642 + $0x60] sm:$0xff]
    %v656 = vld [vmem:[%s642 + $0x68] sm:$0xff]
    %v657 = vld [vmem:[%s642 + $0x70] sm:$0xff]
    %v658 = vld [vmem:[%s642 + $0x78] sm:$0xff]
    %659 = vmatprep.subr.mxu0 0.0
    %660 = vmatpush1.msra.mxu0 %v643
    %661 = vmatprep.subr.mxu0 0.0
    %662 = vmatpush1.msra.mxu0 %v644
    %663 = vmatprep.subr.mxu0 0.0
    %664 = vmatpush1.msra.mxu0 %v645
    %665 = vmatprep.subr.mxu0 0.0
    %666 = vmatpush1.msra.mxu0 %v646
    %667 = vmatprep.subr.mxu0 0.0
    %668 = vmatpush1.msra.mxu0 %v647
    %669 = vmatprep.subr.mxu0 0.0
    %670 = vmatpush1.msra.mxu0 %v648
    %671 = vmatprep.subr.mxu0 0.0
    %672 = vmatpush1.msra.mxu0 %v649
    %673 = vmatprep.subr.mxu0 0.0
    %674 = vmatpush1.msra.mxu0 %v650
    %675 = vmatprep.subr.mxu0 0.0
    %676 = vmatpush1.msra.mxu0 %v651
    %677 = vmatprep.subr.mxu0 0.0
    %678 = vmatpush1.msra.mxu0 %v652
    %679 = vmatprep.subr.mxu0 0.0
    %680 = vmatpush1.msra.mxu0 %v653
    %681 = vmatprep.subr.mxu0 0.0
    %682 = vmatpush1.msra.mxu0 %v654
    %683 = vmatprep.subr.mxu0 0.0
    %684 = vmatpush1.msra.mxu0 %v655
    %685 = vmatprep.subr.mxu0 0.0
    %686 = vmatpush1.msra.mxu0 %v656
    %687 = vmatprep.subr.mxu0 0.0
    %688 = vmatpush1.msra.mxu0 %v657
    %689 = vmatprep.subr.mxu0 0.0
    %690 = vmatpush1.msra.mxu0 %v658
    %691 = vmatprep.subr.mxu0 0.0
    %692 = vmatpush1.msra.mxu0 0.0
    %693 = vmatprep.subr.mxu0 0.0
    %694 = vmatpush1.msra.mxu0 0.0
    %695 = vmatprep.subr.mxu0 0.0
    %696 = vmatpush1.msra.mxu0 0.0
    %697 = vmatprep.subr.mxu0 0.0
    %698 = vmatpush1.msra.mxu0 0.0
    %699 = vmatprep.subr.mxu0 0.0
    %700 = vmatpush1.msra.mxu0 0.0
    %701 = vmatprep.subr.mxu0 0.0
    %702 = vmatpush1.msra.mxu0 0.0
    %703 = vmatprep.subr.mxu0 0.0
    %704 = vmatpush1.msra.mxu0 0.0
    %705 = vmatprep.subr.mxu0 0.0
    %706 = vmatpush1.msra.mxu0 0.0
    %707 = vmatprep.subr.mxu0 0.0
    %708 = vmatpush1.msra.mxu0 0.0
    %709 = vmatprep.subr.mxu0 0.0
    %710 = vmatpush1.msra.mxu0 0.0
    %711 = vmatprep.subr.mxu0 0.0
    %712 = vmatpush1.msra.mxu0 0.0
    %713 = vmatprep.subr.mxu0 0.0
    %714 = vmatpush1.msra.mxu0 0.0
    %715 = vmatprep.subr.mxu0 0.0
    %716 = vmatpush1.msra.mxu0 0.0
    %717 = vmatprep.subr.mxu0 0.0
    %718 = vmatpush1.msra.mxu0 0.0
    %719 = vmatprep.subr.mxu0 0.0
    %720 = vmatpush1.msra.mxu0 0.0
    %721 = vmatprep.subr.mxu0 0.0
    %722 = vmatpush1.msra.mxu0 0.0
    %723 = vmatprep.mubr.f32.mxu0 0.0
    %724 = vmatmul.mubr.f32.gmra.mrb[0].mxu0 %v435
    %v725 = vpop.f32.mrb[0].mxu0
    %v726 = vadd.f32 0.0, %v725
    %v727 = vpop.f32.mrb[0].mxu0
    %728 = vmatprep.mubr.f32.mxu0 0.0
    %729 = vmatmul.mubr.f32.gmra.mrb[0].mxu0 %v436
    %v730 = vpop.f32.mrb[0].mxu0
    %v731 = vadd.f32 0.0, %v730
    %v732 = vpop.f32.mrb[0].mxu0
    %733 = vmatprep.mubr.f32.mxu0 0.0
    %734 = vmatmul.mubr.f32.gmra.mrb[0].mxu0 %v437
    %v735 = vpop.f32.mrb[0].mxu0
    %v736 = vadd.f32 0.0, %v735
    %v737 = vpop.f32.mrb[0].mxu0
    %738 = vmatprep.mubr.f32.mxu0 0.0
    %739 = vmatmul.mubr.f32.gmra.mrb[0].mxu0 %v438
    %v740 = vpop.f32.mrb[0].mxu0
    %v741 = vadd.f32 0.0, %v740
    %v742 = vpop.f32.mrb[0].mxu0
    %743 = vdwg.mxu0
    %v744 = vadd.f32 %v624, %v726
    %v745 = vadd.f32 %v629, %v731
    %v746 = vadd.f32 %v634, %v736
    %v747 = vadd.f32 %v639, %v741
    %v748 = vlaneseq
    %v749 = vshrl.u32 %v748, 7
    %v750 = vsub.s32 1, %v749
    %v751 = vrot.slane %v53, %v750
    %v752 = vadd.f32 %v744, %v751
    %v753 = vadd.f32 %v745, %v751
    %v754 = vadd.f32 %v746, %v751
    %v755 = vadd.f32 %v747, %v751
    %v756 = vadd.f32 %v752, %v753
    %v757 = vadd.f32 %v756, %v754
    %v758 = vadd.f32 %v757, %v755
    %v759 = vrot.slane %v758, 4
    %v760 = vadd.f32 %v758, %v759
    %v761 = vrot.slane %v760, 2
    %v762 = vadd.f32 %v760, %v761
    %v763 = vrot.slane %v762, 1
    %v764 = vadd.f32 %v762, %v763
    %v765 = vmul.f32 %v752, %v752
    %v766 = vmul.f32 %v753, %v753
    %v767 = vmul.f32 %v754, %v754
    %v768 = vmul.f32 %v755, %v755
    %v769 = vadd.f32 %v765, %v766
    %v770 = vadd.f32 %v769, %v767
    %v771 = vadd.f32 %v770, %v768
    %v772 = vrot.slane %v771, 4
    %v773 = vadd.f32 %v771, %v772
    %v774 = vrot.slane %v773, 2
    %v775 = vadd.f32 %v773, %v774
    %v776 = vrot.slane %v775, 1
    %v777 = vadd.f32 %v775, %v776
    %v778 = vsel %vm314, %v764, %v777
    %779 = vmatprep.subr.mxu0 0.0
    %780 = vmatpush1.msra.mxu0 %v37
    %781 = vmatprep.subr.mxu0 0.0
    %782 = vmatpush1.msra.mxu0 %v38
    %783 = vmatprep.subr.mxu0 0.0
    %784 = vmatpush1.msra.mxu0 %v39
    %785 = vmatprep.subr.mxu0 0.0
    %786 = vmatpush1.msra.mxu0 %v40
    %787 = vmatprep.subr.mxu0 0.0
    %788 = vmatpush1.msra.mxu0 %v41
    %789 = vmatprep.subr.mxu0 0.0
    %790 = vmatpush1.msra.mxu0 %v42
    %791 = vmatprep.subr.mxu0 0.0
    %792 = vmatpush1.msra.mxu0 %v43
    %793 = vmatprep.subr.mxu0 0.0
    %794 = vmatpush1.msra.mxu0 %v44
    %795 = vmatprep.subr.mxu0 0.0
    %796 = vmatpush1.msra.mxu0 %v45
    %797 = vmatprep.subr.mxu0 0.0
    %798 = vmatpush1.msra.mxu0 %v46
    %799 = vmatprep.subr.mxu0 0.0
    %800 = vmatpush1.msra.mxu0 %v47
    %801 = vmatprep.subr.mxu0 0.0
    %802 = vmatpush1.msra.mxu0 %v48
    %803 = vmatprep.subr.mxu0 0.0
    %804 = vmatpush1.msra.mxu0 %v49
    %805 = vmatprep.subr.mxu0 0.0
    %806 = vmatpush1.msra.mxu0 %v50
    %807 = vmatprep.subr.mxu0 0.0
    %808 = vmatpush1.msra.mxu0 %v51
    %809 = vmatprep.subr.mxu0 0.0
    %810 = vmatpush1.msra.mxu0 %v52
    %811 = vmatprep.subr.mxu0 0.0
    %812 = vmatpush1.msra.mxu0 0.0
    %813 = vmatprep.subr.mxu0 0.0
    %814 = vmatpush1.msra.mxu0 0.0
    %815 = vmatprep.subr.mxu0 0.0
    %816 = vmatpush1.msra.mxu0 0.0
    %817 = vmatprep.subr.mxu0 0.0
    %818 = vmatpush1.msra.mxu0 0.0
    %819 = vmatprep.subr.mxu0 0.0
    %820 = vmatpush1.msra.mxu0 0.0
    %821 = vmatprep.subr.mxu0 0.0
    %822 = vmatpush1.msra.mxu0 0.0
    %823 = vmatprep.subr.mxu0 0.0
    %824 = vmatpush1.msra.mxu0 0.0
    %825 = vmatprep.subr.mxu0 0.0
    %826 = vmatpush1.msra.mxu0 0.0
    %827 = vmatprep.subr.mxu0 0.0
    %828 = vmatpush1.msra.mxu0 0.0
    %829 = vmatprep.subr.mxu0 0.0
    %830 = vmatpush1.msra.mxu0 0.0
    %831 = vmatprep.subr.mxu0 0.0
    %832 = vmatpush1.msra.mxu0 0.0
    %833 = vmatprep.subr.mxu0 0.0
    %834 = vmatpush1.msra.mxu0 0.0
    %835 = vmatprep.subr.mxu0 0.0
    %836 = vmatpush1.msra.mxu0 0.0
    %837 = vmatprep.subr.mxu0 0.0
    %838 = vmatpush1.msra.mxu0 0.0
    %839 = vmatprep.subr.mxu0 0.0
    %840 = vmatpush1.msra.mxu0 0.0
    %841 = vmatprep.subr.mxu0 0.0
    %842 = vmatpush1.msra.mxu0 0.0
    %843 = vmatprep.mubr.f32.mxu0 0.0
    %844 = vmatmul.mubr.f32.gmra.mrb[0].mxu0 %v778
    %v845 = vpop.f32.mrb[0].mxu0
    %v846 = vadd.f32 0.0, %v845
    %v847 = vpop.f32.mrb[0].mxu0
    %848 = vdwg.mxu0
    %v849 = vmul.f32 %v846, 0.5
    %v850 = vmul.f32 %v849, %v849
    %v852 = vrot.slane %v850, 7
    %v854 = vsub.f32 %v849, %v852
    %v855 = vmax.f32 %v854, 0.0
    %v856 = vlaneseq
    %v857 = vshrl.u32 %v856, 7
    %v858 = vsub.s32 0, %v857
    %v859 = vrot.slane %v849, %v858
    %v860 = vsub.f32 %v752, %v859
    %v861 = vsub.f32 %v753, %v859
    %v862 = vsub.f32 %v754, %v859
    %v863 = vsub.f32 %v755, %v859
    %v864 = vadd.f32 %v855, 1e-05
    %v865 = vrsqrt.pop %v864
    %v867 = vrot.slane %v865, 4
    %v869 = vmul.f32 %v53, %v867
    %v870 = vlaneseq
    %v871 = vshrl.u32 %v870, 7
    %v872 = vsub.s32 5, %v871
    %v873 = vrot.slane %v869, %v872
    %v874 = vmul.f32 %v860, %v873
    %v875 = vmul.f32 %v861, %v873
    %v876 = vmul.f32 %v862, %v873
    %v877 = vmul.f32 %v863, %v873
    %v878 = vlaneseq
    %v879 = vshrl.u32 %v878, 7
    %v880 = vsub.s32 6, %v879
    %v881 = vrot.slane %v53, %v880
    %v882 = vadd.f32 %v874, %v881
    %v883 = vadd.f32 %v875, %v881
    %v884 = vadd.f32 %v876, %v881
    %v885 = vadd.f32 %v877, %v881
    %v886 = vmax.f32 %v882, 0.0
    %v887 = vmax.f32 %v883, 0.0
    %v888 = vmax.f32 %v884, 0.0
    %v889 = vmax.f32 %v885, 0.0
    %890 = vst [vmem:[#allocation2 + $0x1] sm:$0xff] %v886
    %891 = vst [vmem:[#allocation2 + $0x9] sm:$0xff] %v887
    %892 = vst [vmem:[#allocation2 + $0x19] sm:$0xff] %v888
    %893 = vst [vmem:[#allocation2 + $0x21] sm:$0xff] %v889
    %v894 = vld [vmem:[#allocation2] sm:$0xff]
    %v895 = vld [vmem:[#allocation2 + $0x8] sm:$0xff]
    %v896 = vld [vmem:[#allocation2 + $0x18] sm:$0xff]
    %v897 = vld [vmem:[#allocation2 + $0x20] sm:$0xff]
    %v898 = vld [vmem:[#allocation2 + $0x2] sm:$0xff]
    %v899 = vld [vmem:[#allocation2 + $0xa] sm:$0xff]
    %v900 = vld [vmem:[#allocation2 + $0x1a] sm:$0xff]
    %v901 = vld [vmem:[#allocation2 + $0x22] sm:$0xff]
    %v902 = vld [vmem:[#allocation3] sm:$0xff]
    %v903 = vld [vmem:[#allocation3 + $0x8] sm:$0xff]
    %v904 = vld [vmem:[#allocation3 + $0x10] sm:$0xff]
    %v905 = vld [vmem:[#allocation3 + $0x18] sm:$0xff]
    %v906 = vld [vmem:[#allocation3 + $0x20] sm:$0xff]
    %v907 = vld [vmem:[#allocation3 + $0x28] sm:$0xff]
    %v908 = vld [vmem:[#allocation3 + $0x30] sm:$0xff]
    %v909 = vld [vmem:[#allocation3 + $0x38] sm:$0xff]
    %v910 = vld [vmem:[#allocation3 + $0x40] sm:$0xff]
    %v911 = vld [vmem:[#allocation3 + $0x48] sm:$0xff]
    %v912 = vld [vmem:[#allocation3 + $0x50] sm:$0xff]
    %v913 = vld [vmem:[#allocation3 + $0x58] sm:$0xff]
    %v914 = vld [vmem:[#allocation3 + $0x60] sm:$0xff]
    %v915 = vld [vmem:[#allocation3 + $0x68] sm:$0xff]
    %v916 = vld [vmem:[#allocation3 + $0x70] sm:$0xff]
    %v917 = vld [vmem:[#allocation3 + $0x78] sm:$0xff]
    %s918 = scalar_lea.vmem [#allocation3], 128
    %v919 = vld [vmem:[%s918] sm:$0xff]
    %v920 = vld [vmem:[%s918 + $0x8] sm:$0xff]
    %v921 = vld [vmem:[%s918 + $0x10] sm:$0xff]
    %v922 = vld [vmem:[%s918 + $0x18] sm:$0xff]
    %v923 = vld [vmem:[%s918 + $0x20] sm:$0xff]
    %v924 = vld [vmem:[%s918 + $0x28] sm:$0xff]
    %v925 = vld [vmem:[%s918 + $0x30] sm:$0xff]
    %v926 = vld [vmem:[%s918 + $0x38] sm:$0xff]
    %v927 = vld [vmem:[%s918 + $0x40] sm:$0xff]
    %v928 = vld [vmem:[%s918 + $0x48] sm:$0xff]
    %v929 = vld [vmem:[%s918 + $0x50] sm:$0xff]
    %v930 = vld [vmem:[%s918 + $0x58] sm:$0xff]
    %v931 = vld [vmem:[%s918 + $0x60] sm:$0xff]
    %v932 = vld [vmem:[%s918 + $0x68] sm:$0xff]
    %v933 = vld [vmem:[%s918 + $0x70] sm:$0xff]
    %v934 = vld [vmem:[%s918 + $0x78] sm:$0xff]
    %935 = vmatprep.subr.mxu0 0.0
    %936 = vmatpush1.msra.mxu0 %v919
    %937 = vmatprep.subr.mxu0 0.0
    %938 = vmatpush1.msra.mxu0 %v920
    %939 = vmatprep.subr.mxu0 0.0
    %940 = vmatpush1.msra.mxu0 %v921
    %941 = vmatprep.subr.mxu0 0.0
    %942 = vmatpush1.msra.mxu0 %v922
    %943 = vmatprep.subr.mxu0 0.0
    %944 = vmatpush1.msra.mxu0 %v923
    %945 = vmatprep.subr.mxu0 0.0
    %946 = vmatpush1.msra.mxu0 %v924
    %947 = vmatprep.subr.mxu0 0.0
    %948 = vmatpush1.msra.mxu0 %v925
    %949 = vmatprep.subr.mxu0 0.0
    %950 = vmatpush1.msra.mxu0 %v926
    %951 = vmatprep.subr.mxu0 0.0
    %952 = vmatpush1.msra.mxu0 %v927
    %953 = vmatprep.subr.mxu0 0.0
    %954 = vmatpush1.msra.mxu0 %v928
    %955 = vmatprep.subr.mxu0 0.0
    %956 = vmatpush1.msra.mxu0 %v929
    %957 = vmatprep.subr.mxu0 0.0
    %958 = vmatpush1.msra.mxu0 %v930
    %959 = vmatprep.subr.mxu0 0.0
    %960 = vmatpush1.msra.mxu0 %v931
    %961 = vmatprep.subr.mxu0 0.0
    %962 = vmatpush1.msra.mxu0 %v932
    %963 = vmatprep.subr.mxu0 0.0
    %964 = vmatpush1.msra.mxu0 %v933
    %965 = vmatprep.subr.mxu0 0.0
    %966 = vmatpush1.msra.mxu0 %v934
    %967 = vmatprep.subr.mxu0 0.0
    %968 = vmatpush1.msra.mxu0 0.0
    %969 = vmatprep.subr.mxu0 0.0
    %970 = vmatpush1.msra.mxu0 0.0
    %971 = vmatprep.subr.mxu0 0.0
    %972 = vmatpush1.msra.mxu0 0.0
    %973 = vmatprep.subr.mxu0 0.0
    %974 = vmatpush1.msra.mxu0 0.0
    %975 = vmatprep.subr.mxu0 0.0
    %976 = vmatpush1.msra.mxu0 0.0
    %977 = vmatprep.subr.mxu0 0.0
    %978 = vmatpush1.msra.mxu0 0.0
    %979 = vmatprep.subr.mxu0 0.0
    %980 = vmatpush1.msra.mxu0 0.0
    %981 = vmatprep.subr.mxu0 0.0
    %982 = vmatpush1.msra.mxu0 0.0
    %983 = vmatprep.subr.mxu0 0.0
    %984 = vmatpush1.msra.mxu0 0.0
    %985 = vmatprep.subr.mxu0 0.0
    %986 = vmatpush1.msra.mxu0 0.0
    %987 = vmatprep.subr.mxu0 0.0
    %988 = vmatpush1.msra.mxu0 0.0
    %989 = vmatprep.subr.mxu0 0.0
    %990 = vmatpush1.msra.mxu0 0.0
    %991 = vmatprep.subr.mxu0 0.0
    %992 = vmatpush1.msra.mxu0 0.0
    %993 = vmatprep.subr.mxu0 0.0
    %994 = vmatpush1.msra.mxu0 0.0
    %995 = vmatprep.subr.mxu0 0.0
    %996 = vmatpush1.msra.mxu0 0.0
    %997 = vmatprep.subr.mxu0 0.0
    %998 = vmatpush1.msra.mxu0 0.0
    %999 = vmatprep.mubr.f32.mxu0 0.0
    %1000 = vmatmul.mubr.f32.gmra.mrb[0].mxu0 %v886
    %v1001 = vpop.f32.mrb[0].mxu0
    %v1002 = vadd.f32 0.0, %v1001
    %v1003 = vpop.f32.mrb[0].mxu0
    %1004 = vmatprep.mubr.f32.mxu0 0.0
    %1005 = vmatmul.mubr.f32.gmra.mrb[0].mxu0 %v887
    %v1006 = vpop.f32.mrb[0].mxu0
    %v1007 = vadd.f32 0.0, %v1006
    %v1008 = vpop.f32.mrb[0].mxu0
    %1009 = vmatprep.mubr.f32.mxu0 0.0
    %1010 = vmatmul.mubr.f32.gmra.mrb[0].mxu0 %v888
    %v1011 = vpop.f32.mrb[0].mxu0
    %v1012 = vadd.f32 0.0, %v1011
    %v1013 = vpop.f32.mrb[0].mxu0
    %1014 = vmatprep.mubr.f32.mxu0 0.0
    %1015 = vmatmul.mubr.f32.gmra.mrb[0].mxu0 %v889
    %v1016 = vpop.f32.mrb[0].mxu0
    %v1017 = vadd.f32 0.0, %v1016
    %v1018 = vpop.f32.mrb[0].mxu0
    %1019 = vdwg.mxu0
    %1020 = vmatprep.subr.mxu0 0.0
    %1021 = vmatpush1.msra.mxu0 %v902
    %1022 = vmatprep.subr.mxu0 0.0
    %1023 = vmatpush1.msra.mxu0 %v903
    %1024 = vmatprep.subr.mxu0 0.0
    %1025 = vmatpush1.msra.mxu0 %v904
    %1026 = vmatprep.subr.mxu0 0.0
    %1027 = vmatpush1.msra.mxu0 %v905
    %1028 = vmatprep.subr.mxu0 0.0
    %1029 = vmatpush1.msra.mxu0 %v906
    %1030 = vmatprep.subr.mxu0 0.0
    %1031 = vmatpush1.msra.mxu0 %v907
    %1032 = vmatprep.subr.mxu0 0.0
    %1033 = vmatpush1.msra.mxu0 %v908
    %1034 = vmatprep.subr.mxu0 0.0
    %1035 = vmatpush1.msra.mxu0 %v909
    %1036 = vmatprep.subr.mxu0 0.0
    %1037 = vmatpush1.msra.mxu0 %v910
    %1038 = vmatprep.subr.mxu0 0.0
    %1039 = vmatpush1.msra.mxu0 %v911
    %1040 = vmatprep.subr.mxu0 0.0
    %1041 = vmatpush1.msra.mxu0 %v912
    %1042 = vmatprep.subr.mxu0 0.0
    %1043 = vmatpush1.msra.mxu0 %v913
    %1044 = vmatprep.subr.mxu0 0.0
    %1045 = vmatpush1.msra.mxu0 %v914
    %1046 = vmatprep.subr.mxu0 0.0
    %1047 = vmatpush1.msra.mxu0 %v915
    %1048 = vmatprep.subr.mxu0 0.0
    %1049 = vmatpush1.msra.mxu0 %v916
    %1050 = vmatprep.subr.mxu0 0.0
    %1051 = vmatpush1.msra.mxu0 %v917
    %1052 = vmatprep.subr.mxu0 0.0
    %1053 = vmatpush1.msra.mxu0 0.0
    %1054 = vmatprep.subr.mxu0 0.0
    %1055 = vmatpush1.msra.mxu0 0.0
    %1056 = vmatprep.subr.mxu0 0.0
    %1057 = vmatpush1.msra.mxu0 0.0
    %1058 = vmatprep.subr.mxu0 0.0
    %1059 = vmatpush1.msra.mxu0 0.0
    %1060 = vmatprep.subr.mxu0 0.0
    %1061 = vmatpush1.msra.mxu0 0.0
    %1062 = vmatprep.subr.mxu0 0.0
    %1063 = vmatpush1.msra.mxu0 0.0
    %1064 = vmatprep.subr.mxu0 0.0
    %1065 = vmatpush1.msra.mxu0 0.0
    %1066 = vmatprep.subr.mxu0 0.0
    %1067 = vmatpush1.msra.mxu0 0.0
    %1068 = vmatprep.subr.mxu0 0.0
    %1069 = vmatpush1.msra.mxu0 0.0
    %1070 = vmatprep.subr.mxu0 0.0
    %1071 = vmatpush1.msra.mxu0 0.0
    %1072 = vmatprep.subr.mxu0 0.0
    %1073 = vmatpush1.msra.mxu0 0.0
    %1074 = vmatprep.subr.mxu0 0.0
    %1075 = vmatpush1.msra.mxu0 0.0
    %1076 = vmatprep.subr.mxu0 0.0
    %1077 = vmatpush1.msra.mxu0 0.0
    %1078 = vmatprep.subr.mxu0 0.0
    %1079 = vmatpush1.msra.mxu0 0.0
    %1080 = vmatprep.subr.mxu0 0.0
    %1081 = vmatpush1.msra.mxu0 0.0
    %1082 = vmatprep.subr.mxu0 0.0
    %1083 = vmatpush1.msra.mxu0 0.0
    %1084 = vmatprep.mubr.f32.mxu0 0.0
    %1085 = vmatmul.mubr.f32.gmra.mrb[0].mxu0 %v894
    %v1086 = vpop.f32.mrb[0].mxu0
    %v1087 = vadd.f32 %v1002, %v1086
    %v1088 = vpop.f32.mrb[0].mxu0
    %1089 = vmatprep.mubr.f32.mxu0 0.0
    %1090 = vmatmul.mubr.f32.gmra.mrb[0].mxu0 %v895
    %v1091 = vpop.f32.mrb[0].mxu0
    %v1092 = vadd.f32 %v1007, %v1091
    %v1093 = vpop.f32.mrb[0].mxu0
    %1094 = vmatprep.mubr.f32.mxu0 0.0
    %1095 = vmatmul.mubr.f32.gmra.mrb[0].mxu0 %v896
    %v1096 = vpop.f32.mrb[0].mxu0
    %v1097 = vadd.f32 %v1012, %v1096
    %v1098 = vpop.f32.mrb[0].mxu0
    %1099 = vmatprep.mubr.f32.mxu0 0.0
    %1100 = vmatmul.mubr.f32.gmra.mrb[0].mxu0 %v897
    %v1101 = vpop.f32.mrb[0].mxu0
    %v1102 = vadd.f32 %v1017, %v1101
    %v1103 = vpop.f32.mrb[0].mxu0
    %1104 = vdwg.mxu0
    %s1105 = scalar_lea.vmem [#allocation3], 256
    %v1106 = vld [vmem:[%s1105] sm:$0xff]
    %v1107 = vld [vmem:[%s1105 + $0x8] sm:$0xff]
    %v1108 = vld [vmem:[%s1105 + $0x10] sm:$0xff]
    %v1109 = vld [vmem:[%s1105 + $0x18] sm:$0xff]
    %v1110 = vld [vmem:[%s1105 + $0x20] sm:$0xff]
    %v1111 = vld [vmem:[%s1105 + $0x28] sm:$0xff]
    %v1112 = vld [vmem:[%s1105 + $0x30] sm:$0xff]
    %v1113 = vld [vmem:[%s1105 + $0x38] sm:$0xff]
    %v1114 = vld [vmem:[%s1105 + $0x40] sm:$0xff]
    %v1115 = vld [vmem:[%s1105 + $0x48] sm:$0xff]
    %v1116 = vld [vmem:[%s1105 + $0x50] sm:$0xff]
    %v1117 = vld [vmem:[%s1105 + $0x58] sm:$0xff]
    %v1118 = vld [vmem:[%s1105 + $0x60] sm:$0xff]
    %v1119 = vld [vmem:[%s1105 + $0x68] sm:$0xff]
    %v1120 = vld [vmem:[%s1105 + $0x70] sm:$0xff]
    %v1121 = vld [vmem:[%s1105 + $0x78] sm:$0xff]
    %1122 = vmatprep.subr.mxu0 0.0
    %1123 = vmatpush1.msra.mxu0 %v1106
    %1124 = vmatprep.subr.mxu0 0.0
    %1125 = vmatpush1.msra.mxu0 %v1107
    %1126 = vmatprep.subr.mxu0 0.0
    %1127 = vmatpush1.msra.mxu0 %v1108
    %1128 = vmatprep.subr.mxu0 0.0
    %1129 = vmatpush1.msra.mxu0 %v1109
    %1130 = vmatprep.subr.mxu0 0.0
    %1131 = vmatpush1.msra.mxu0 %v1110
    %1132 = vmatprep.subr.mxu0 0.0
    %1133 = vmatpush1.msra.mxu0 %v1111
    %1134 = vmatprep.subr.mxu0 0.0
    %1135 = vmatpush1.msra.mxu0 %v1112
    %1136 = vmatprep.subr.mxu0 0.0
    %1137 = vmatpush1.msra.mxu0 %v1113
    %1138 = vmatprep.subr.mxu0 0.0
    %1139 = vmatpush1.msra.mxu0 %v1114
    %1140 = vmatprep.subr.mxu0 0.0
    %1141 = vmatpush1.msra.mxu0 %v1115
    %1142 = vmatprep.subr.mxu0 0.0
    %1143 = vmatpush1.msra.mxu0 %v1116
    %1144 = vmatprep.subr.mxu0 0.0
    %1145 = vmatpush1.msra.mxu0 %v1117
    %1146 = vmatprep.subr.mxu0 0.0
    %1147 = vmatpush1.msra.mxu0 %v1118
    %1148 = vmatprep.subr.mxu0 0.0
    %1149 = vmatpush1.msra.mxu0 %v1119
    %1150 = vmatprep.subr.mxu0 0.0
    %1151 = vmatpush1.msra.mxu0 %v1120
    %1152 = vmatprep.subr.mxu0 0.0
    %1153 = vmatpush1.msra.mxu0 %v1121
    %1154 = vmatprep.subr.mxu0 0.0
    %1155 = vmatpush1.msra.mxu0 0.0
    %1156 = vmatprep.subr.mxu0 0.0
    %1157 = vmatpush1.msra.mxu0 0.0
    %1158 = vmatprep.subr.mxu0 0.0
    %1159 = vmatpush1.msra.mxu0 0.0
    %1160 = vmatprep.subr.mxu0 0.0
    %1161 = vmatpush1.msra.mxu0 0.0
    %1162 = vmatprep.subr.mxu0 0.0
    %1163 = vmatpush1.msra.mxu0 0.0
    %1164 = vmatprep.subr.mxu0 0.0
    %1165 = vmatpush1.msra.mxu0 0.0
    %1166 = vmatprep.subr.mxu0 0.0
    %1167 = vmatpush1.msra.mxu0 0.0
    %1168 = vmatprep.subr.mxu0 0.0
    %1169 = vmatpush1.msra.mxu0 0.0
    %1170 = vmatprep.subr.mxu0 0.0
    %1171 = vmatpush1.msra.mxu0 0.0
    %1172 = vmatprep.subr.mxu0 0.0
    %1173 = vmatpush1.msra.mxu0 0.0
    %1174 = vmatprep.subr.mxu0 0.0
    %1175 = vmatpush1.msra.mxu0 0.0
    %1176 = vmatprep.subr.mxu0 0.0
    %1177 = vmatpush1.msra.mxu0 0.0
    %1178 = vmatprep.subr.mxu0 0.0
    %1179 = vmatpush1.msra.mxu0 0.0
    %1180 = vmatprep.subr.mxu0 0.0
    %1181 = vmatpush1.msra.mxu0 0.0
    %1182 = vmatprep.subr.mxu0 0.0
    %1183 = vmatpush1.msra.mxu0 0.0
    %1184 = vmatprep.subr.mxu0 0.0
    %1185 = vmatpush1.msra.mxu0 0.0
    %1186 = vmatprep.mubr.f32.mxu0 0.0
    %1187 = vmatmul.mubr.f32.gmra.mrb[0].mxu0 %v898
    %v1188 = vpop.f32.mrb[0].mxu0
    %v1189 = vadd.f32 0.0, %v1188
    %v1190 = vpop.f32.mrb[0].mxu0
    %1191 = vmatprep.mubr.f32.mxu0 0.0
    %1192 = vmatmul.mubr.f32.gmra.mrb[0].mxu0 %v899
    %v1193 = vpop.f32.mrb[0].mxu0
    %v1194 = vadd.f32 0.0, %v1193
    %v1195 = vpop.f32.mrb[0].mxu0
    %1196 = vmatprep.mubr.f32.mxu0 0.0
    %1197 = vmatmul.mubr.f32.gmra.mrb[0].mxu0 %v900
    %v1198 = vpop.f32.mrb[0].mxu0
    %v1199 = vadd.f32 0.0, %v1198
    %v1200 = vpop.f32.mrb[0].mxu0
    %1201 = vmatprep.mubr.f32.mxu0 0.0
    %1202 = vmatmul.mubr.f32.gmra.mrb[0].mxu0 %v901
    %v1203 = vpop.f32.mrb[0].mxu0
    %v1204 = vadd.f32 0.0, %v1203
    %v1205 = vpop.f32.mrb[0].mxu0
    %1206 = vdwg.mxu0
    %v1207 = vadd.f32 %v1087, %v1189
    %v1208 = vadd.f32 %v1092, %v1194
    %v1209 = vadd.f32 %v1097, %v1199
    %v1210 = vadd.f32 %v1102, %v1204
    %v1211 = vlaneseq
    %v1212 = vshrl.u32 %v1211, 7
    %v1213 = vsub.s32 2, %v1212
    %v1214 = vrot.slane %v53, %v1213
    %v1215 = vadd.f32 %v1207, %v1214
    %v1216 = vadd.f32 %v1208, %v1214
    %v1217 = vadd.f32 %v1209, %v1214
    %v1218 = vadd.f32 %v1210, %v1214
    %v1219 = vadd.f32 %v1215, %v1216
    %v1220 = vadd.f32 %v1219, %v1217
    %v1221 = vadd.f32 %v1220, %v1218
    %v1222 = vrot.slane %v1221, 4
    %v1223 = vadd.f32 %v1221, %v1222
    %v1224 = vrot.slane %v1223, 2
    %v1225 = vadd.f32 %v1223, %v1224
    %v1226 = vrot.slane %v1225, 1
    %v1227 = vadd.f32 %v1225, %v1226
    %v1228 = vmul.f32 %v1215, %v1215
    %v1229 = vmul.f32 %v1216, %v1216
    %v1230 = vmul.f32 %v1217, %v1217
    %v1231 = vmul.f32 %v1218, %v1218
    %v1232 = vadd.f32 %v1228, %v1229
    %v1233 = vadd.f32 %v1232, %v1230
    %v1234 = vadd.f32 %v1233, %v1231
    %v1235 = vrot.slane %v1234, 4
    %v1236 = vadd.f32 %v1234, %v1235
    %v1237 = vrot.slane %v1236, 2
    %v1238 = vadd.f32 %v1236, %v1237
    %v1239 = vrot.slane %v1238, 1
    %v1240 = vadd.f32 %v1238, %v1239
    %v1241 = vsel %vm314, %v1227, %v1240
    %1242 = vmatprep.subr.mxu0 0.0
    %1243 = vmatpush1.msra.mxu0 %v37
    %1244 = vmatprep.subr.mxu0 0.0
    %1245 = vmatpush1.msra.mxu0 %v38
    %1246 = vmatprep.subr.mxu0 0.0
    %1247 = vmatpush1.msra.mxu0 %v39
    %1248 = vmatprep.subr.mxu0 0.0
    %1249 = vmatpush1.msra.mxu0 %v40
    %1250 = vmatprep.subr.mxu0 0.0
    %1251 = vmatpush1.msra.mxu0 %v41
    %1252 = vmatprep.subr.mxu0 0.0
    %1253 = vmatpush1.msra.mxu0 %v42
    %1254 = vmatprep.subr.mxu0 0.0
    %1255 = vmatpush1.msra.mxu0 %v43
    %1256 = vmatprep.subr.mxu0 0.0
    %1257 = vmatpush1.msra.mxu0 %v44
    %1258 = vmatprep.subr.mxu0 0.0
    %1259 = vmatpush1.msra.mxu0 %v45
    %1260 = vmatprep.subr.mxu0 0.0
    %1261 = vmatpush1.msra.mxu0 %v46
    %1262 = vmatprep.subr.mxu0 0.0
    %1263 = vmatpush1.msra.mxu0 %v47
    %1264 = vmatprep.subr.mxu0 0.0
    %1265 = vmatpush1.msra.mxu0 %v48
    %1266 = vmatprep.subr.mxu0 0.0
    %1267 = vmatpush1.msra.mxu0 %v49
    %1268 = vmatprep.subr.mxu0 0.0
    %1269 = vmatpush1.msra.mxu0 %v50
    %1270 = vmatprep.subr.mxu0 0.0
    %1271 = vmatpush1.msra.mxu0 %v51
    %1272 = vmatprep.subr.mxu0 0.0
    %1273 = vmatpush1.msra.mxu0 %v52
    %1274 = vmatprep.subr.mxu0 0.0
    %1275 = vmatpush1.msra.mxu0 0.0
    %1276 = vmatprep.subr.mxu0 0.0
    %1277 = vmatpush1.msra.mxu0 0.0
    %1278 = vmatprep.subr.mxu0 0.0
    %1279 = vmatpush1.msra.mxu0 0.0
    %1280 = vmatprep.subr.mxu0 0.0
    %1281 = vmatpush1.msra.mxu0 0.0
    %1282 = vmatprep.subr.mxu0 0.0
    %1283 = vmatpush1.msra.mxu0 0.0
    %1284 = vmatprep.subr.mxu0 0.0
    %1285 = vmatpush1.msra.mxu0 0.0
    %1286 = vmatprep.subr.mxu0 0.0
    %1287 = vmatpush1.msra.mxu0 0.0
    %1288 = vmatprep.subr.mxu0 0.0
    %1289 = vmatpush1.msra.mxu0 0.0
    %1290 = vmatprep.subr.mxu0 0.0
    %1291 = vmatpush1.msra.mxu0 0.0
    %1292 = vmatprep.subr.mxu0 0.0
    %1293 = vmatpush1.msra.mxu0 0.0
    %1294 = vmatprep.subr.mxu0 0.0
    %1295 = vmatpush1.msra.mxu0 0.0
    %1296 = vmatprep.subr.mxu0 0.0
    %1297 = vmatpush1.msra.mxu0 0.0
    %1298 = vmatprep.subr.mxu0 0.0
    %1299 = vmatpush1.msra.mxu0 0.0
    %1300 = vmatprep.subr.mxu0 0.0
    %1301 = vmatpush1.msra.mxu0 0.0
    %1302 = vmatprep.subr.mxu0 0.0
    %1303 = vmatpush1.msra.mxu0 0.0
    %1304 = vmatprep.subr.mxu0 0.0
    %1305 = vmatpush1.msra.mxu0 0.0
    %1306 = vmatprep.mubr.f32.mxu0 0.0
    %1307 = vmatmul.mubr.f32.gmra.mrb[0].mxu0 %v1241
    %v1308 = vpop.f32.mrb[0].mxu0
    %v1309 = vadd.f32 0.0, %v1308
    %v1310 = vpop.f32.mrb[0].mxu0
    %1311 = vdwg.mxu0
    %v1312 = vmul.f32 %v1309, 0.5
    %v1313 = vmul.f32 %v1312, %v1312
    %v1315 = vrot.slane %v1313, 7
    %v1317 = vsub.f32 %v1312, %v1315
    %v1318 = vmax.f32 %v1317, 0.0
    %v1319 = vlaneseq
    %v1320 = vshrl.u32 %v1319, 7
    %v1321 = vsub.s32 0, %v1320
    %v1322 = vrot.slane %v1312, %v1321
    %v1323 = vsub.f32 %v1215, %v1322
    %v1324 = vsub.f32 %v1216, %v1322
    %v1325 = vsub.f32 %v1217, %v1322
    %v1326 = vsub.f32 %v1218, %v1322
    %v1327 = vadd.f32 %v1318, 1e-05
    %v1328 = vrsqrt.pop %v1327
    %v1330 = vrot.slane %v1328, 2
    %v1332 = vmul.f32 %v53, %v1330
    %v1333 = vlaneseq
    %v1334 = vshrl.u32 %v1333, 7
    %v1335 = vsub.s32 7, %v1334
    %v1336 = vrot.slane %v1332, %v1335
    %v1337 = vmul.f32 %v1323, %v1336
    %v1338 = vmul.f32 %v1324, %v1336
    %v1339 = vmul.f32 %v1325, %v1336
    %v1340 = vmul.f32 %v1326, %v1336
    %v1341 = vlaneseq
    %v1342 = vshrl.u32 %v1341, 7
    %v1343 = vsub.s32 0, %v1342
    %v1344 = vrot.slane %v54, %v1343
    %v1345 = vadd.f32 %v1337, %v1344
    %v1346 = vadd.f32 %v1338, %v1344
    %v1347 = vadd.f32 %v1339, %v1344
    %v1348 = vadd.f32 %v1340, %v1344
    %v1349 = vadd.f32 %v1345, %v419
    %v1350 = vadd.f32 %v1346, %v420
    %v1351 = vadd.f32 %v1347, %v421
    %v1352 = vadd.f32 %v1348, %v422
    %v1353 = vmax.f32 %v1349, 0.0
    %v1354 = vmax.f32 %v1350, 0.0
    %v1355 = vmax.f32 %v1351, 0.0
    %v1356 = vmax.f32 %v1352, 0.0
    %1357 = vst [vmem:[%s6] sm:$0xff] %v1353
    %1358 = vst [vmem:[%s6 + $0x8] sm:$0xff] %v1354
    %1359 = vst [vmem:[%s6 + $0x10] sm:$0xff] %v1355
    %1360 = vst [vmem:[%s6 + $0x18] sm:$0xff] %v1356
    // Predicated region
    $region30: #{decoder_block_apply.1} parent=1 // pred_check
      _
    $region31: #{decoder_block_apply.1} parent=1 // pred_check_branch
      %1362 = sbr.rel (0) target = $region33
    $region32: #{decoder_block_apply.1} parent=1 // pred_region
      _
    $region33: #{decoder_block_apply.1} parent=1 // pred_fallthru
      _
    // Predicated region
    $region34: #{decoder_block_apply.1} parent=1 // pred_check
      _
    $region35: #{decoder_block_apply.1} parent=1 // pred_check_branch
      %1364 = sbr.rel (0) target = $region37
    $region36: #{decoder_block_apply.1} parent=1 // pred_region
      _
    $region37: #{decoder_block_apply.1} parent=1 // pred_fallthru
      _
    %1365 = vsyncpa [#allocation4], 1

</llo_original>
